<compile_context>
chip_gen: v6e
topology: v6e:2x2x1
jax: 0.10.0
libtpu: 0.0.40
codegen_flags: <defaults>
</compile_context>

<pallas_src>
import functools

import jax
import jax.numpy as jnp
import numpy as np
from jax import lax
from jax.experimental import pallas as pl
from jax.experimental.pallas import tpu as pltpu

LEAKY_SLOPE = 0.2
LANE = 128
TK_MAX = 4096      # per-step D-chunk upper bound (review: 2048-4096)
NCORES = 2         # leading 'parallel' axis -> both TCs on v7x; no-op cost on 1-TC chips


def _round_up(x, m):
    return -(-x // m) * m


def _physical_vmem_bytes():
    # v5e/v6e: 128 MiB per core, v7x: 64 MiB; fall back to the smallest figure.
    try:
        info = pltpu.get_tpu_info()
        cap = getattr(info, "vmem_capacity_bytes", None)
        if cap:
            return int(cap)
    except Exception:
        pass
    return 64 << 20


def _partials_kernel(alpha_ref, xr_ref, xf_ref, w1_ref, h_ref, g_ref, *,
                     tk, d_total, npc, mask_tail):
    """Accumulate h = xmix @ W1 and G = W1^T @ W1 over the D (feature) axis.

    Grid = (cores, chunks-per-core): the D reduction runs along the trailing
    'arbitrary' axis; the leading 'parallel' axis emits per-core partials so
    both v7x TensorCores work on independent halves of D.
    """
    c = pl.program_id(0)
    k = pl.program_id(1)

    @pl.when(k == 0)
    def _init():
        h_ref[...] = jnp.zeros_like(h_ref)
        g_ref[...] = jnp.zeros_like(g_ref)

    # alpha blend in f32 (v5e has no bf16 VALU); x/W1 are streamed in stream dtype.
    alpha = alpha_ref[...]                                           # [B,1] f32
    xmix = alpha * xr_ref[...].astype(jnp.float32) + \
        (1.0 - alpha) * xf_ref[...].astype(jnp.float32)              # [B,TK] f32
    w1_k = w1_ref[...]                                               # [TK,H1] stream dtype

    if mask_tail:
        # The last logical chunk may overhang D (no wrapper-side jnp.pad of the
        # W1 / x streams): zero the invalid columns / rows exactly.
        rem = d_total - (c * npc + k) * tk                           # may be <= 0
        col_ok = lax.broadcasted_iota(jnp.int32, xmix.shape, 1) < rem
        row_ok = lax.broadcasted_iota(jnp.int32, w1_k.shape, 0) < rem
        xmix = jnp.where(col_ok, xmix, 0.0)
        w1_k = jnp.where(row_ok, w1_k, jnp.zeros_like(w1_k))

    # h += xmix @ W1_k  (f32 MXU path; quantization points match the reference)
    h_ref[...] += jnp.dot(xmix, w1_k.astype(jnp.float32),
                          preferred_element_type=jnp.float32)
    # G += W1_k^T @ W1_k  (native stream-dtype MXU inputs, exact f32 accumulation)
    g_ref[...] += lax.dot_general(w1_k, w1_k, (((0,), (0,)), ((), ())),
                                  preferred_element_type=jnp.float32)
    # TODO(synk): for H1 >~ 512 the Gram term (2*D*H1^2 flops) can exceed the HBM
    # roofline; switch to a direct / VMEM-cached-W1 accumulation of ||gw @ W1^T||^2.


def wgan_discriminator_loss(params, penalty_weight, xreal, xwrong, xfake,
                            yreal, ywrong, yfake, right_embed, alpha, *,
                            stream_dtype=jnp.bfloat16, tk_max=None):
    """Forward pass of WGANDiscriminatorLoss (alpha passed in for determinism)."""
    del xwrong, right_embed                     # do not affect the loss value
    w1, b1, w2, we, b2 = params
    del we, b2                                  # xmix-independent -> zero gradient

    B = xreal.shape[0]
    D = int(np.prod(xreal.shape[1:]))
    H1 = int(w1.shape[1])

    # --- wgan term: cheap XLA reductions in the wrapper -----------------------
    wgan = yfake.mean() * 0.5 + ywrong.mean() * 0.5 - yreal.mean()

    # --- streamed operands (bf16 by default: the kernel is HBM-bound) ----------
    sbytes = jnp.dtype(stream_dtype).itemsize
    xr = xreal.reshape(B, D).astype(stream_dtype)
    xf = xfake.reshape(B, D).astype(stream_dtype)
    w1s = w1.astype(stream_dtype)               # (D, H1): no H1 lane padding, no jnp.pad
    alpha_f = alpha.reshape(B, 1).astype(jnp.float32)

    # --- D-chunk size from the per-generation VMEM budget ----------------------
    budget = int(0.80 * _physical_vmem_bytes())  # ~51 MiB on v7x, ~102 MiB on v5e/v6e
    b_pad = max(B, 8)                            # sublane-padded VMEM footprint
    h1_pad = _round_up(H1, LANE)                 # lane-padded VMEM footprint
    per_tk = 2 * sbytes * (2 * b_pad + h1_pad)   # double-buffered xr + xf + W1 per column
    fixed = 2 * 4 * (b_pad * h1_pad + h1_pad * h1_pad) + (1 << 20)
    fit = max((budget - fixed) // per_tk, LANE)
    tk = max(LANE, min(TK_MAX, (fit // LANE) * LANE))
    if tk_max is not None:
        tk = min(tk, max(LANE, (int(tk_max) // LANE) * LANE))
    if tk >= D:
        tk, n_chunks = D, 1                      # single full-width block (== full dims)
    else:
        n_chunks = -(-D // tk)

    ncores = NCORES if n_chunks >= NCORES else 1
    npc = -(-n_chunks // ncores)                 # chunks per core
    padded_chunks = ncores * npc
    clamp = padded_chunks != n_chunks            # odd chunk count: re-read last chunk, masked
    mask_tail = padded_chunks * tk != D          # in-kernel masking instead of jnp.pad

    def chunk_idx(c, k):
        l = c * npc + k
        return jnp.minimum(l, n_chunks - 1) if clamp else l

    need = per_tk * tk + fixed + (2 << 20)
    vmem_limit = int(min(budget, max(need, 16 << 20)))

    flops = 2 * B * D * H1 + 2 * D * H1 * H1
    bytes_accessed = sbytes * (2 * B * D + D * H1) + 4 * (B + ncores * (B * H1 + H1 * H1))

    kernel = functools.partial(_partials_kernel, tk=tk, d_total=D, npc=npc,
                               mask_tail=mask_tail)

    h_parts, g_parts = pl.pallas_call(
        kernel,
        out_shape=(jax.ShapeDtypeStruct((ncores, B, H1), jnp.float32),
                   jax.ShapeDtypeStruct((ncores, H1, H1), jnp.float32)),
        grid_spec=pltpu.PrefetchScalarGridSpec(
            num_scalar_prefetch=0,
            grid=(ncores, npc),
            in_specs=[
                pl.BlockSpec((B, 1), lambda c, k: (0, 0)),                  # alpha
                pl.BlockSpec((B, tk), lambda c, k: (0, chunk_idx(c, k))),   # xreal chunk
                pl.BlockSpec((B, tk), lambda c, k: (0, chunk_idx(c, k))),   # xfake chunk
                pl.BlockSpec((tk, H1), lambda c, k: (chunk_idx(c, k), 0)),  # W1 chunk
                # TODO(synk): sweep pipeline_mode=pl.Buffered(3) for the W1/x streams on v5e.
            ],
            out_specs=(
                pl.BlockSpec((None, B, H1), lambda c, k: (c, 0, 0)),        # per-core h
                pl.BlockSpec((None, H1, H1), lambda c, k: (c, 0, 0)),       # per-core Gram
            ),
        ),
        compiler_params=pltpu.CompilerParams(
            dimension_semantics=("parallel", "arbitrary"),
            vmem_limit_bytes=vmem_limit),
        cost_estimate=pl.CostEstimate(flops=int(flops), transcendentals=0,
                                      bytes_accessed=int(bytes_accessed)),
    )(alpha_f, xr, xf, w1s)

    # --- tiny f32 epilogue ([B,H1] / [H1,H1]): mask, gw.G.gw^T, sqrt, mean ------
    h = jnp.sum(h_parts, axis=0) + b1.astype(jnp.float32)                   # [B,H1]
    gram = jnp.sum(g_parts, axis=0)                                         # [H1,H1]
    gw = jnp.where(h > 0.0, 1.0, LEAKY_SLOPE) * w2.astype(jnp.float32)      # leaky' * w2
    # ||grad_b||^2 = gw_b @ G @ gw_b^T (grads = gw @ W1^T is never materialized);
    # PSD but can round slightly negative in f32 -> clamp before sqrt.
    sq = jnp.maximum(jnp.sum(jnp.dot(gw, gram) * gw, axis=1), 0.0)          # [B]
    graddiff = jnp.sqrt(sq) - 1.0
    gradpenalty = jnp.mean(graddiff * graddiff) * penalty_weight
    # TODO(synk): forward-only; end-to-end training needs a custom_vjp with backward
    # kernels for dW1/db1/dw2/dx (autograd does not flow through pallas_call).
    return wgan + gradpenalty


# ---------------------------- pure-JAX reference ------------------------------
def _disc_ref(params, x_flat, embed):
    w1, b1, w2, we, b2 = params
    h = x_flat @ w1 + b1
    a = jnp.where(h > 0.0, h, LEAKY_SLOPE * h)
    return a @ w2.T + embed @ we.T + b2


def _loss_ref(params, penalty_weight, xreal, xfake, yreal, ywrong, yfake,
              embed, alpha):
    B = xreal.shape[0]
    xr = xreal.reshape(B, -1)
    xf = xfake.reshape(B, -1)
    xmix = alpha * xr + (1.0 - alpha) * xf
    grads = jax.grad(lambda xm: jnp.sum(_disc_ref(params, xm, embed)))(xmix)
    gradnorm = jnp.sqrt(jnp.sum(grads * grads, axis=1))
    gp = jnp.mean((gradnorm - 1.0) ** 2) * penalty_weight
    wgan = yfake.mean() * 0.5 + ywrong.mean() * 0.5 - yreal.mean()
    return wgan + gp


def _make_inputs(key, B, C, H, W, E, H1):
    D = C * H * W
    ks = jax.random.split(key, 11)
    xreal = jax.random.normal(ks[0], (B, C, H, W), jnp.float32)
    xwrong = jax.random.normal(ks[1], (B, C, H, W), jnp.float32)
    xfake = jax.random.normal(ks[2], (B, C, H, W), jnp.float32)
    yreal = jax.random.normal(ks[3], (B, 1), jnp.float32)
    ywrong = jax.random.normal(ks[4], (B, 1), jnp.float32)
    yfake = jax.random.normal(ks[5], (B, 1), jnp.float32)
    right_embed = jax.random.normal(ks[6], (B, E), jnp.float32)
    alpha = jax.random.uniform(ks[7], (B, 1), jnp.float32)   # torch.rand(B,1,1,1) analogue
    w1 = jax.random.normal(ks[8], (D, H1), jnp.float32) * 0.05
    b1 = jnp.zeros((1, H1), jnp.float32)
    w2 = jax.random.normal(ks[9], (1, H1), jnp.float32) * 0.1
    we = jax.random.normal(ks[10], (1, E), jnp.float32) * 0.1
    b2 = jnp.zeros((1, 1), jnp.float32)
    params = (w1, b1, w2, we, b2)
    return params, xreal, xwrong, xfake, yreal, ywrong, yfake, right_embed, alpha


if __name__ == "__main__":
    penalty_weight = 10.0
    k1, k2 = jax.random.split(jax.random.PRNGKey(0))

    # --- config 1: B=2, C=4, 16x16, H1=32 (D=1024) -----------------------------
    (params, xreal, xwrong, xfake, yreal, ywrong, yfake, embed, alpha) = \
        _make_inputs(k1, 2, 4, 16, 16, 8, 32)

    # (a) f32 streaming vs f32 reference (tight tolerance)
    loss32 = wgan_discriminator_loss(params, penalty_weight, xreal, xwrong, xfake,
                                     yreal, ywrong, yfake, embed, alpha,
                                     stream_dtype=jnp.float32)
    jax.block_until_ready(loss32)
    ref32 = _loss_ref(params, penalty_weight, xreal, xfake, yreal, ywrong, yfake,
                      embed, alpha)
    np.testing.assert_allclose(np.array(loss32), np.array(ref32),
                               rtol=1e-4, atol=1e-4)

    # (b) default bf16 streaming vs a reference fed the same bf16-rounded x / W1
    #     (isolates kernel numerics from input quantization).
    loss16 = wgan_discriminator_loss(params, penalty_weight, xreal, xwrong, xfake,
                                     yreal, ywrong, yfake, embed, alpha)
    jax.block_until_ready(loss16)
    q = lambda a: a.astype(jnp.bfloat16).astype(jnp.float32)
    w1, b1, w2, we, b2 = params
    ref16 = _loss_ref((q(w1), b1, w2, we, b2), penalty_weight, q(xreal), q(xfake),
                      yreal, ywrong, yfake, embed, alpha)
    np.testing.assert_allclose(np.array(loss16), np.array(ref16),
                               rtol=2e-3, atol=2e-3)

    # --- config 2: odd D = 3*15*15 = 675 with forced small TK:
    #     exercises multi-chunk grid, the 2-core split, in-kernel tail masking
    #     (384: 2 even chunks; 256: 3 chunks -> clamped odd split).
    (params2, xreal2, xwrong2, xfake2, yreal2, ywrong2, yfake2, embed2, alpha2) = \
        _make_inputs(k2, 2, 3, 15, 15, 8, 32)
    ref_mc = _loss_ref(params2, penalty_weight, xreal2, xfake2, yreal2, ywrong2,
                       yfake2, embed2, alpha2)
    for forced_tk in (384, 256):
        loss_mc = wgan_discriminator_loss(params2, penalty_weight, xreal2, xwrong2,
                                          xfake2, yreal2, ywrong2, yfake2, embed2,
                                          alpha2, stream_dtype=jnp.float32,
                                          tk_max=forced_tk)
        jax.block_until_ready(loss_mc)
        np.testing.assert_allclose(np.array(loss_mc), np.array(ref_mc),
                                   rtol=1e-4, atol=1e-4)

    print("KERNEL_OK")
</pallas_src>

<mosaic_0001>
module attributes {stable_mosaic.version = 11 : i64} {
  func.func @_partials_kernel(%arg0: i32, %arg1: i32, %arg2: memref<2x1xf32, #tpu.memory_space<vmem>>, %arg3: memref<2x1024xf32, #tpu.memory_space<vmem>>, %arg4: memref<2x1024xf32, #tpu.memory_space<vmem>>, %arg5: memref<1024x32xf32, #tpu.memory_space<vmem>>, %arg6: memref<1x2x32xf32, #tpu.memory_space<vmem>>, %arg7: memref<1x32x32xf32, #tpu.memory_space<vmem>>) attributes {dimension_semantics = [#tpu.dimension_semantics<parallel>, #tpu.dimension_semantics<arbitrary>], iteration_bounds = array<i64: 1, 1>, scalar_prefetch = 0 : i64, scratch_operands = 0 : i64, tpu.core_type = #tpu.core_type<tc>, window_params = [{pipeline_mode = #tpu.pipeline_mode<synchronous>, transform_indices = @transform_0, window_bounds = array<i64: 2, 1>}, {transform_indices = @transform_1, window_bounds = array<i64: 2, 1024>}, {transform_indices = @transform_2, window_bounds = array<i64: 2, 1024>}, {transform_indices = @transform_3, window_bounds = array<i64: 1024, 32>}, {transform_indices = @transform_4, window_bounds = array<i64: 1, 2, 32>}, {transform_indices = @transform_5, window_bounds = array<i64: 1, 32, 32>}]} {
    %c0_i32 = arith.constant 0 : i32
    %0 = arith.cmpi eq, %arg1, %c0_i32 : i32
    %1 = arith.extui %0 : i1 to i32
    %c0_i32_0 = arith.constant 0 : i32
    %2 = arith.cmpi ne, %1, %c0_i32_0 : i32
    scf.if %2 {
      %cst_22 = arith.constant 0.000000e+00 : f32
      %28 = vector.broadcast %cst_22 : f32 to vector<2x32xf32>
      %c0_23 = arith.constant 0 : index
      %c0_24 = arith.constant 0 : index
      %c0_25 = arith.constant 0 : index
      %29 = vector.load %arg6[%c0_23, %c0_24, %c0_25] : memref<1x2x32xf32, #tpu.memory_space<vmem>>, vector<1x2x32xf32>
      %30 = vector.shape_cast %29 : vector<1x2x32xf32> to vector<2x32xf32>
      %31 = vector.shape_cast %28 : vector<2x32xf32> to vector<1x2x32xf32>
      tpu.vector_store %arg6[%c0_23, %c0_24, %c0_25], %31 {strides = array<i32>} : memref<1x2x32xf32, #tpu.memory_space<vmem>>, vector<1x2x32xf32>,
      %cst_26 = arith.constant 0.000000e+00 : f32
      %32 = vector.broadcast %cst_26 : f32 to vector<32x32xf32>
      %c0_27 = arith.constant 0 : index
      %c0_28 = arith.constant 0 : index
      %c0_29 = arith.constant 0 : index
      %33 = vector.load %arg7[%c0_27, %c0_28, %c0_29] : memref<1x32x32xf32, #tpu.memory_space<vmem>>, vector<1x32x32xf32>
      %34 = vector.shape_cast %33 : vector<1x32x32xf32> to vector<32x32xf32>
      %35 = vector.shape_cast %32 : vector<32x32xf32> to vector<1x32x32xf32>
      tpu.vector_store %arg7[%c0_27, %c0_28, %c0_29], %35 {strides = array<i32>} : memref<1x32x32xf32, #tpu.memory_space<vmem>>, vector<1x32x32xf32>,
    } else {
    }
    %c0 = arith.constant 0 : index
    %c0_1 = arith.constant 0 : index
    %3 = vector.load %arg2[%c0, %c0_1] : memref<2x1xf32, #tpu.memory_space<vmem>>, vector<2x1xf32>
    %c0_2 = arith.constant 0 : index
    %c0_3 = arith.constant 0 : index
    %4 = vector.load %arg3[%c0_2, %c0_3] : memref<2x1024xf32, #tpu.memory_space<vmem>>, vector<2x1024xf32>
    %5 = vector.broadcast %3 : vector<2x1xf32> to vector<2x1024xf32>
    %6 = arith.mulf %5, %4 : vector<2x1024xf32>
    %cst = arith.constant 1.000000e+00 : f32
    %7 = vector.broadcast %cst : f32 to vector<2x1xf32>
    %8 = arith.subf %7, %3 : vector<2x1xf32>
    %c0_4 = arith.constant 0 : index
    %c0_5 = arith.constant 0 : index
    %9 = vector.load %arg4[%c0_4, %c0_5] : memref<2x1024xf32, #tpu.memory_space<vmem>>, vector<2x1024xf32>
    %10 = vector.broadcast %8 : vector<2x1xf32> to vector<2x1024xf32>
    %11 = arith.mulf %10, %9 : vector<2x1024xf32>
    %12 = arith.addf %6, %11 : vector<2x1024xf32>
    %c0_6 = arith.constant 0 : index
    %c0_7 = arith.constant 0 : index
    %13 = vector.load %arg5[%c0_6, %c0_7] : memref<1024x32xf32, #tpu.memory_space<vmem>>, vector<1024x32xf32>
    %c0_8 = arith.constant 0 : index
    %c0_9 = arith.constant 0 : index
    %c0_10 = arith.constant 0 : index
    %14 = vector.load %arg6[%c0_8, %c0_9, %c0_10] : memref<1x2x32xf32, #tpu.memory_space<vmem>>, vector<1x2x32xf32>
    %15 = vector.shape_cast %14 : vector<1x2x32xf32> to vector<2x32xf32>
    %cst_11 = arith.constant dense<0.000000e+00> : vector<2x32xf32>
    %16 = tpu.matmul %12, %13, %cst_11 {dimension_numbers = #tpu.dot_dimension_numbers<[1], [0], [0], [1], [0, 0, 1, 1], [], []>} : vector<2x1024xf32>, vector<1024x32xf32>, vector<2x32xf32> -> vector<2x32xf32>
    %17 = arith.addf %15, %16 : vector<2x32xf32>
    %c0_12 = arith.constant 0 : index
    %c0_13 = arith.constant 0 : index
    %c0_14 = arith.constant 0 : index
    %18 = vector.load %arg6[%c0_12, %c0_13, %c0_14] : memref<1x2x32xf32, #tpu.memory_space<vmem>>, vector<1x2x32xf32>
    %19 = vector.shape_cast %18 : vector<1x2x32xf32> to vector<2x32xf32>
    %20 = vector.shape_cast %17 : vector<2x32xf32> to vector<1x2x32xf32>
    tpu.vector_store %arg6[%c0_12, %c0_13, %c0_14], %20 {strides = array<i32>} : memref<1x2x32xf32, #tpu.memory_space<vmem>>, vector<1x2x32xf32>,
    %c0_15 = arith.constant 0 : index
    %c0_16 = arith.constant 0 : index
    %c0_17 = arith.constant 0 : index
    %21 = vector.load %arg7[%c0_15, %c0_16, %c0_17] : memref<1x32x32xf32, #tpu.memory_space<vmem>>, vector<1x32x32xf32>
    %22 = vector.shape_cast %21 : vector<1x32x32xf32> to vector<32x32xf32>
    %cst_18 = arith.constant dense<0.000000e+00> : vector<32x32xf32>
    %23 = tpu.matmul %13, %13, %cst_18 {dimension_numbers = #tpu.dot_dimension_numbers<[0], [0], [1], [1], [0, 1, 1, 1], [], []>} : vector<1024x32xf32>, vector<1024x32xf32>, vector<32x32xf32> -> vector<32x32xf32>
    %24 = arith.addf %22, %23 : vector<32x32xf32>
    %c0_19 = arith.constant 0 : index
    %c0_20 = arith.constant 0 : index
    %c0_21 = arith.constant 0 : index
    %25 = vector.load %arg7[%c0_19, %c0_20, %c0_21] : memref<1x32x32xf32, #tpu.memory_space<vmem>>, vector<1x32x32xf32>
    %26 = vector.shape_cast %25 : vector<1x32x32xf32> to vector<32x32xf32>
    %27 = vector.shape_cast %24 : vector<32x32xf32> to vector<1x32x32xf32>
    tpu.vector_store %arg7[%c0_19, %c0_20, %c0_21], %27 {strides = array<i32>} : memref<1x32x32xf32, #tpu.memory_space<vmem>>, vector<1x32x32xf32>,
    return
  }
  func.func @transform_0(%arg0: i32, %arg1: i32) -> (i32, i32) {
    %c0_i32 = arith.constant 0 : i32
    %c0_i32_0 = arith.constant 0 : i32
    %c0_i32_1 = arith.constant 0 : i32
    return %c0_i32, %c0_i32_0 : i32, i32
  }
  func.func @transform_1(%arg0: i32, %arg1: i32) -> (i32, i32) {
    %c1_i32 = arith.constant 1 : i32
    %0 = arith.muli %arg0, %c1_i32 : i32
    %1 = arith.addi %0, %arg1 : i32
    %c0_i32 = arith.constant 0 : i32
    %c0_i32_0 = arith.constant 0 : i32
    return %c0_i32, %1 : i32, i32
  }
  func.func @transform_2(%arg0: i32, %arg1: i32) -> (i32, i32) {
    %c1_i32 = arith.constant 1 : i32
    %0 = arith.muli %arg0, %c1_i32 : i32
    %1 = arith.addi %0, %arg1 : i32
    %c0_i32 = arith.constant 0 : i32
    %c0_i32_0 = arith.constant 0 : i32
    return %c0_i32, %1 : i32, i32
  }
  func.func @transform_3(%arg0: i32, %arg1: i32) -> (i32, i32) {
    %c1_i32 = arith.constant 1 : i32
    %0 = arith.muli %arg0, %c1_i32 : i32
    %1 = arith.addi %0, %arg1 : i32
    %c0_i32 = arith.constant 0 : i32
    %c0_i32_0 = arith.constant 0 : i32
    return %1, %c0_i32 : i32, i32
  }
  func.func @transform_4(%arg0: i32, %arg1: i32) -> (i32, i32, i32) {
    %c0_i32 = arith.constant 0 : i32
    %c0_i32_0 = arith.constant 0 : i32
    %c0_i32_1 = arith.constant 0 : i32
    return %arg0, %c0_i32, %c0_i32_0 : i32, i32, i32
  }
  func.func @transform_5(%arg0: i32, %arg1: i32) -> (i32, i32, i32) {
    %c0_i32 = arith.constant 0 : i32
    %c0_i32_0 = arith.constant 0 : i32
    %c0_i32_1 = arith.constant 0 : i32
    return %arg0, %c0_i32, %c0_i32_0 : i32, i32, i32
  }
}

</mosaic_0001>

<llo_original>
// kernel: tpu_custom_call.1
$region0: #{tpu_custom_call.1}
  #allocation0 [shape = 'u32[]', space=smem, size = 0x4, offset = 0x4, fixed_abs, tag = 'smem constant byte address 0x4 - core index']
  #allocation1 [shape = 'u32[144,128]{1,0:T(1,128)}', space=vmem, size = 0x12000, scoped, tag = 'internal scratch']
  %s0 = inlined_call_operand.vmem [shape: f32[2,1], index: 0, kind: input, shape index: {}]
  %s1 = inlined_call_operand.vmem [shape: f32[2,1024], index: 1, kind: input, shape index: {}]
  %s2 = inlined_call_operand.vmem [shape: f32[2,1024], index: 2, kind: input, shape index: {}]
  %s3 = inlined_call_operand.vmem [shape: f32[1024,32], index: 3, kind: input, shape index: {}]
  %s4 = inlined_call_operand.hbm [shape: f32[1,2,32], index: 4, kind: output, shape index: {0}]
  %s5 = inlined_call_operand.hbm [shape: f32[1,32,32], index: 5, kind: output, shape index: {1}]
  %6 = xla_tuple %s4, %s5
  %s7 = sld [smem:[#allocation0]]
  $region38: #{tpu_custom_call.1} parent=0
    _
  %s9 = ssub.s32 1, %s7
  %s10 = scalar_select 0, %s9, %s7
  $region1: #{tpu_custom_call.1} parent=0
    #allocation2 [shape = 'u8[1024]{0}', space=vmem, size = 0x400, scoped, tag = 'output window, operand 0, single buffered']
    #allocation3 [shape = 's32[1]{0}', space=sflag, size = 0x4, scoped, tag = 'scoped memory for tpu_custom_call.1']
    #allocation4 [shape = 'u8[16384]{0}', space=vmem, size = 0x4000, scoped, tag = 'output window, operand 1, single buffered']
    #allocation5 [shape = 's32[1]{0}', space=sflag, size = 0x4, scoped, tag = 'scoped memory for tpu_custom_call.1']
    %11 = vsyncpa [#allocation3], 0
    %12 = vsyncpa [#allocation5], 0
    // Predicated region
    $region2: #{tpu_custom_call.1} parent=1 // pred_check
      _
    $region3: #{tpu_custom_call.1} parent=1 // pred_check_branch
      %14 = sbr.rel (0) target = $region5
    $region4: #{tpu_custom_call.1} parent=1 // pred_region
      _
    $region5: #{tpu_custom_call.1} parent=1 // pred_fallthru
      _
    // Predicated region
    $region6: #{tpu_custom_call.1} parent=1 // pred_check
      _
    $region7: #{tpu_custom_call.1} parent=1 // pred_check_branch
      %16 = sbr.rel (0) target = $region9
    $region8: #{tpu_custom_call.1} parent=1 // pred_region
      %s17 = sadd.s32 0, 0
      %s18 = smul.u32 8, %s17
      %p19 = scmp.lt.s32.totalorder %s18, 7
      %s20 = scalar_select %p19, %s18, 7
      %s21 = smul.addr %s20, 2
      %s22 = scalar_lea.vmem %s1, %s21
      %s23 = sadd.s32 0, 0
      %s24 = smul.u32 8, %s23
    $region9: #{tpu_custom_call.1} parent=1 // pred_fallthru
      _
    // Predicated region
    $region10: #{tpu_custom_call.1} parent=1 // pred_check
      _
    $region11: #{tpu_custom_call.1} parent=1 // pred_check_branch
      %26 = sbr.rel (0) target = $region13
    $region12: #{tpu_custom_call.1} parent=1 // pred_region
      %s27 = sadd.s32 0, 0
      %s28 = smul.u32 8, %s27
      %p29 = scmp.lt.s32.totalorder %s28, 7
      %s30 = scalar_select %p29, %s28, 7
      %s31 = smul.addr %s30, 2
      %s32 = scalar_lea.vmem %s2, %s31
      %s33 = sadd.s32 0, 0
      %s34 = smul.u32 8, %s33
    $region13: #{tpu_custom_call.1} parent=1 // pred_fallthru
      _
    // Predicated region
    $region14: #{tpu_custom_call.1} parent=1 // pred_check
      _
    $region15: #{tpu_custom_call.1} parent=1 // pred_check_branch
      %36 = sbr.rel (0) target = $region17
    $region16: #{tpu_custom_call.1} parent=1 // pred_region
      %s37 = sadd.s32 0, 0
      %s38 = smul.u32 128, %s37
      %p39 = scmp.lt.s32.totalorder %s38, 127
      %s40 = scalar_select %p39, %s38, 127
      %s41 = smul.addr %s40, 8
      %s42 = scalar_lea.vmem %s3, %s41
      %s43 = sadd.s32 0, 0
      %s44 = smul.u32 128, %s43
    $region17: #{tpu_custom_call.1} parent=1 // pred_fallthru
      _
    %s45 = sadd.s32 0, 0
    %s46 = smul.u32 8, %s45
    %p47 = scmp.lt.s32.totalorder %s46, 7
    %s48 = scalar_select %p47, %s46, 7
    %s49 = smul.addr %s48, 2
    %s50 = scalar_lea.vmem %s1, %s49
    %s51 = sadd.s32 0, 0
    %s52 = smul.u32 8, %s51
    %p53 = scmp.lt.s32.totalorder %s52, 7
    %s54 = scalar_select %p53, %s52, 7
    %s55 = smul.addr %s54, 2
    %s56 = scalar_lea.vmem %s2, %s55
    %s57 = sadd.s32 0, 0
    %s58 = smul.u32 128, %s57
    %p59 = scmp.lt.s32.totalorder %s58, 127
    %s60 = scalar_select %p59, %s58, 127
    %s61 = smul.addr %s60, 8
    %s62 = scalar_lea.vmem %s3, %s61
    %s63 = sadd.s32 0, 0
    %s64 = smul.u32 8, %s63
    %p65 = scmp.lt.s32.totalorder %s64, 7
    %s66 = scalar_select %p65, %s64, 7
    %s67 = smul.addr %s66, 2
    %s68 = scalar_lea.vmem %s1, %s67
    %s69 = sadd.s32 0, 0
    %s70 = smul.u32 8, %s69
    %s71 = sadd.s32 0, 0
    %s72 = smul.u32 8, %s71
    %p73 = scmp.lt.s32.totalorder %s72, 7
    %s74 = scalar_select %p73, %s72, 7
    %s75 = smul.addr %s74, 2
    %s76 = scalar_lea.vmem %s2, %s75
    %s77 = sadd.s32 0, 0
    %s78 = smul.u32 8, %s77
    %s79 = sadd.s32 0, 0
    %s80 = smul.u32 128, %s79
    %p81 = scmp.lt.s32.totalorder %s80, 127
    %s82 = scalar_select %p81, %s80, 127
    %s83 = smul.addr %s82, 8
    %s84 = scalar_lea.vmem %s3, %s83
    %s85 = sadd.s32 0, 0
    %s86 = smul.u32 128, %s85
    %p87 = scmp.eq.s32.totalorder 0, 0
    // Predicated region
    $region18: #{tpu_custom_call.1} parent=1 // pred_check
      %p88 = pneg %p87
    $region19: #{tpu_custom_call.1} parent=1 // pred_check_branch
      %90 = sbr.rel (%p88) target = $region21
    $region20: #{tpu_custom_call.1} parent=1 // pred_region
      %vm91 = vcmask 254976
      %92 = vst.msk [vmem:[#allocation2] sm:$0x3] %vm91, 0.0
      %vm93 = vcmask 261120
      %94 = vst.msk [vmem:[#allocation4] sm:$0xff] %vm93, 0.0
      %95 = vst.msk [vmem:[#allocation4 + $0x8] sm:$0xff] %vm93, 0.0
      %96 = vst.msk [vmem:[#allocation4 + $0x10] sm:$0xff] %vm93, 0.0
      %97 = vst.msk [vmem:[#allocation4 + $0x18] sm:$0xff] %vm93, 0.0
    $region21: #{tpu_custom_call.1} parent=1 // pred_fallthru
      _
    %v98 = vld [vmem:[%s0] sm:$0x3]
    %v99 = vld [vmem:[%s68] sm:$0xff]
    %v100 = vld [vmem:[%s68 + $0x8] sm:$0xff]
    %102 = vset.pattern.permute.xlu0 0
    %103 = vperm.xlu0 %102, %v98
    %v104 = vpop.permute.xlu0 %103
    %v108 = vcombine.high %v99, %v99
    %v110 = vunpack.c.l.s4 1983009808
    %v111 = vunpack.c.0.s8 %v110
    %v112 = vlaneseq
    %v113 = vshrl.u32 %v112, 7
    %v114 = vsub.s32 %v111, %v113
    %v115 = vrot.slane %v99, %v114
    %v117 = vunpack.c.l.s4 1983009808
    %v118 = vunpack.c.0.s8 %v117
    %v119 = vlaneseq
    %v120 = vshrl.u32 %v119, 7
    %v121 = vsub.s32 %v118, %v120
    %v122 = vrot.slane %v108, %v121
    %v123 = vcombine.high %v115, %v115
    %v124 = vcombine.high %v122, %v122
    %v125 = vcombine.high %v100, %v100
    %v127 = vunpack.c.l.s4 1983009808
    %v128 = vunpack.c.0.s8 %v127
    %v129 = vlaneseq
    %v130 = vshrl.u32 %v129, 7
    %v131 = vsub.s32 %v128, %v130
    %v132 = vrot.slane %v100, %v131
    %v134 = vunpack.c.l.s4 1983009808
    %v135 = vunpack.c.0.s8 %v134
    %v136 = vlaneseq
    %v137 = vshrl.u32 %v136, 7
    %v138 = vsub.s32 %v135, %v137
    %v139 = vrot.slane %v125, %v138
    %v140 = vcombine.high %v132, %v132
    %v141 = vcombine.high %v139, %v139
    %v150 = vmul.f32 %v104, %v115
    %v151 = vmul.f32 %v104, %v123
    %v152 = vmul.f32 %v104, %v122
    %v153 = vmul.f32 %v104, %v124
    %v154 = vmul.f32 %v104, %v132
    %v155 = vmul.f32 %v104, %v140
    %v156 = vmul.f32 %v104, %v139
    %v157 = vmul.f32 %v104, %v141
    %v158 = vsub.f32 1.0, %v98
    %v159 = vld [vmem:[%s76] sm:$0xff]
    %v160 = vld [vmem:[%s76 + $0x8] sm:$0xff]
    %162 = vset.pattern.permute.xlu0 0
    %163 = vperm.xlu0 %162, %v158
    %v164 = vpop.permute.xlu0 %163
    %v168 = vcombine.high %v159, %v159
    %v170 = vunpack.c.l.s4 1983009808
    %v171 = vunpack.c.0.s8 %v170
    %v172 = vlaneseq
    %v173 = vshrl.u32 %v172, 7
    %v174 = vsub.s32 %v171, %v173
    %v175 = vrot.slane %v159, %v174
    %v177 = vunpack.c.l.s4 1983009808
    %v178 = vunpack.c.0.s8 %v177
    %v179 = vlaneseq
    %v180 = vshrl.u32 %v179, 7
    %v181 = vsub.s32 %v178, %v180
    %v182 = vrot.slane %v168, %v181
    %v183 = vcombine.high %v175, %v175
    %v184 = vcombine.high %v182, %v182
    %v185 = vcombine.high %v160, %v160
    %v187 = vunpack.c.l.s4 1983009808
    %v188 = vunpack.c.0.s8 %v187
    %v189 = vlaneseq
    %v190 = vshrl.u32 %v189, 7
    %v191 = vsub.s32 %v188, %v190
    %v192 = vrot.slane %v160, %v191
    %v194 = vunpack.c.l.s4 1983009808
    %v195 = vunpack.c.0.s8 %v194
    %v196 = vlaneseq
    %v197 = vshrl.u32 %v196, 7
    %v198 = vsub.s32 %v195, %v197
    %v199 = vrot.slane %v185, %v198
    %v200 = vcombine.high %v192, %v192
    %v201 = vcombine.high %v199, %v199
    %v210 = vmul.f32 %v164, %v175
    %v211 = vmul.f32 %v164, %v183
    %v212 = vmul.f32 %v164, %v182
    %v213 = vmul.f32 %v164, %v184
    %v214 = vmul.f32 %v164, %v192
    %v215 = vmul.f32 %v164, %v200
    %v216 = vmul.f32 %v164, %v199
    %v217 = vmul.f32 %v164, %v201
    %v218 = vadd.f32 %v150, %v210
    %v219 = vadd.f32 %v151, %v211
    %v220 = vadd.f32 %v152, %v212
    %v221 = vadd.f32 %v153, %v213
    %v222 = vadd.f32 %v154, %v214
    %v223 = vadd.f32 %v155, %v215
    %v224 = vadd.f32 %v156, %v216
    %v225 = vadd.f32 %v157, %v217
    %v226 = vld [vmem:[%s84] sm:$0xff]
    %v227 = vld [vmem:[%s84 + $0x8] sm:$0xff]
    %v228 = vld [vmem:[%s84 + $0x10] sm:$0xff]
    %v229 = vld [vmem:[%s84 + $0x18] sm:$0xff]
    %v230 = vld [vmem:[%s84 + $0x20] sm:$0xff]
    %v231 = vld [vmem:[%s84 + $0x28] sm:$0xff]
    %v232 = vld [vmem:[%s84 + $0x30] sm:$0xff]
    %v233 = vld [vmem:[%s84 + $0x38] sm:$0xff]
    %v234 = vld [vmem:[%s84 + $0x40] sm:$0xff]
    %v235 = vld [vmem:[%s84 + $0x48] sm:$0xff]
    %v236 = vld [vmem:[%s84 + $0x50] sm:$0xff]
    %v237 = vld [vmem:[%s84 + $0x58] sm:$0xff]
    %v238 = vld [vmem:[%s84 + $0x60] sm:$0xff]
    %v239 = vld [vmem:[%s84 + $0x68] sm:$0xff]
    %v240 = vld [vmem:[%s84 + $0x70] sm:$0xff]
    %v241 = vld [vmem:[%s84 + $0x78] sm:$0xff]
    %v242 = vld [vmem:[%s84 + $0x80] sm:$0xff]
    %v243 = vld [vmem:[%s84 + $0x88] sm:$0xff]
    %v244 = vld [vmem:[%s84 + $0x90] sm:$0xff]
    %v245 = vld [vmem:[%s84 + $0x98] sm:$0xff]
    %v246 = vld [vmem:[%s84 + $0xa0] sm:$0xff]
    %v247 = vld [vmem:[%s84 + $0xa8] sm:$0xff]
    %v248 = vld [vmem:[%s84 + $0xb0] sm:$0xff]
    %v249 = vld [vmem:[%s84 + $0xb8] sm:$0xff]
    %v250 = vld [vmem:[%s84 + $0xc0] sm:$0xff]
    %v251 = vld [vmem:[%s84 + $0xc8] sm:$0xff]
    %v252 = vld [vmem:[%s84 + $0xd0] sm:$0xff]
    %v253 = vld [vmem:[%s84 + $0xd8] sm:$0xff]
    %v254 = vld [vmem:[%s84 + $0xe0] sm:$0xff]
    %v255 = vld [vmem:[%s84 + $0xe8] sm:$0xff]
    %v256 = vld [vmem:[%s84 + $0xf0] sm:$0xff]
    %v257 = vld [vmem:[%s84 + $0xf8] sm:$0xff]
    %v258 = vld [vmem:[%s84 + $0x100] sm:$0xff]
    %v259 = vld [vmem:[%s84 + $0x108] sm:$0xff]
    %v260 = vld [vmem:[%s84 + $0x110] sm:$0xff]
    %v261 = vld [vmem:[%s84 + $0x118] sm:$0xff]
    %v262 = vld [vmem:[%s84 + $0x120] sm:$0xff]
    %v263 = vld [vmem:[%s84 + $0x128] sm:$0xff]
    %v264 = vld [vmem:[%s84 + $0x130] sm:$0xff]
    %v265 = vld [vmem:[%s84 + $0x138] sm:$0xff]
    %v266 = vld [vmem:[%s84 + $0x140] sm:$0xff]
    %v267 = vld [vmem:[%s84 + $0x148] sm:$0xff]
    %v268 = vld [vmem:[%s84 + $0x150] sm:$0xff]
    %v269 = vld [vmem:[%s84 + $0x158] sm:$0xff]
    %v270 = vld [vmem:[%s84 + $0x160] sm:$0xff]
    %v271 = vld [vmem:[%s84 + $0x168] sm:$0xff]
    %v272 = vld [vmem:[%s84 + $0x170] sm:$0xff]
    %v273 = vld [vmem:[%s84 + $0x178] sm:$0xff]
    %v274 = vld [vmem:[%s84 + $0x180] sm:$0xff]
    %v275 = vld [vmem:[%s84 + $0x188] sm:$0xff]
    %v276 = vld [vmem:[%s84 + $0x190] sm:$0xff]
    %v277 = vld [vmem:[%s84 + $0x198] sm:$0xff]
    %v278 = vld [vmem:[%s84 + $0x1a0] sm:$0xff]
    %v279 = vld [vmem:[%s84 + $0x1a8] sm:$0xff]
    %v280 = vld [vmem:[%s84 + $0x1b0] sm:$0xff]
    %v281 = vld [vmem:[%s84 + $0x1b8] sm:$0xff]
    %v282 = vld [vmem:[%s84 + $0x1c0] sm:$0xff]
    %v283 = vld [vmem:[%s84 + $0x1c8] sm:$0xff]
    %v284 = vld [vmem:[%s84 + $0x1d0] sm:$0xff]
    %v285 = vld [vmem:[%s84 + $0x1d8] sm:$0xff]
    %v286 = vld [vmem:[%s84 + $0x1e0] sm:$0xff]
    %v287 = vld [vmem:[%s84 + $0x1e8] sm:$0xff]
    %v288 = vld [vmem:[%s84 + $0x1f0] sm:$0xff]
    %v289 = vld [vmem:[%s84 + $0x1f8] sm:$0xff]
    %v290 = vld [vmem:[%s84 + $0x200] sm:$0xff]
    %v291 = vld [vmem:[%s84 + $0x208] sm:$0xff]
    %v292 = vld [vmem:[%s84 + $0x210] sm:$0xff]
    %v293 = vld [vmem:[%s84 + $0x218] sm:$0xff]
    %v294 = vld [vmem:[%s84 + $0x220] sm:$0xff]
    %v295 = vld [vmem:[%s84 + $0x228] sm:$0xff]
    %v296 = vld [vmem:[%s84 + $0x230] sm:$0xff]
    %v297 = vld [vmem:[%s84 + $0x238] sm:$0xff]
    %v298 = vld [vmem:[%s84 + $0x240] sm:$0xff]
    %v299 = vld [vmem:[%s84 + $0x248] sm:$0xff]
    %v300 = vld [vmem:[%s84 + $0x250] sm:$0xff]
    %v301 = vld [vmem:[%s84 + $0x258] sm:$0xff]
    %v302 = vld [vmem:[%s84 + $0x260] sm:$0xff]
    %v303 = vld [vmem:[%s84 + $0x268] sm:$0xff]
    %v304 = vld [vmem:[%s84 + $0x270] sm:$0xff]
    %v305 = vld [vmem:[%s84 + $0x278] sm:$0xff]
    %v306 = vld [vmem:[%s84 + $0x280] sm:$0xff]
    %v307 = vld [vmem:[%s84 + $0x288] sm:$0xff]
    %v308 = vld [vmem:[%s84 + $0x290] sm:$0xff]
    %v309 = vld [vmem:[%s84 + $0x298] sm:$0xff]
    %v310 = vld [vmem:[%s84 + $0x2a0] sm:$0xff]
    %v311 = vld [vmem:[%s84 + $0x2a8] sm:$0xff]
    %v312 = vld [vmem:[%s84 + $0x2b0] sm:$0xff]
    %v313 = vld [vmem:[%s84 + $0x2b8] sm:$0xff]
    %v314 = vld [vmem:[%s84 + $0x2c0] sm:$0xff]
    %v315 = vld [vmem:[%s84 + $0x2c8] sm:$0xff]
    %v316 = vld [vmem:[%s84 + $0x2d0] sm:$0xff]
    %v317 = vld [vmem:[%s84 + $0x2d8] sm:$0xff]
    %v318 = vld [vmem:[%s84 + $0x2e0] sm:$0xff]
    %v319 = vld [vmem:[%s84 + $0x2e8] sm:$0xff]
    %v320 = vld [vmem:[%s84 + $0x2f0] sm:$0xff]
    %v321 = vld [vmem:[%s84 + $0x2f8] sm:$0xff]
    %v322 = vld [vmem:[%s84 + $0x300] sm:$0xff]
    %v323 = vld [vmem:[%s84 + $0x308] sm:$0xff]
    %v324 = vld [vmem:[%s84 + $0x310] sm:$0xff]
    %v325 = vld [vmem:[%s84 + $0x318] sm:$0xff]
    %v326 = vld [vmem:[%s84 + $0x320] sm:$0xff]
    %v327 = vld [vmem:[%s84 + $0x328] sm:$0xff]
    %v328 = vld [vmem:[%s84 + $0x330] sm:$0xff]
    %v329 = vld [vmem:[%s84 + $0x338] sm:$0xff]
    %v330 = vld [vmem:[%s84 + $0x340] sm:$0xff]
    %v331 = vld [vmem:[%s84 + $0x348] sm:$0xff]
    %v332 = vld [vmem:[%s84 + $0x350] sm:$0xff]
    %v333 = vld [vmem:[%s84 + $0x358] sm:$0xff]
    %v334 = vld [vmem:[%s84 + $0x360] sm:$0xff]
    %v335 = vld [vmem:[%s84 + $0x368] sm:$0xff]
    %v336 = vld [vmem:[%s84 + $0x370] sm:$0xff]
    %v337 = vld [vmem:[%s84 + $0x378] sm:$0xff]
    %v338 = vld [vmem:[%s84 + $0x380] sm:$0xff]
    %v339 = vld [vmem:[%s84 + $0x388] sm:$0xff]
    %v340 = vld [vmem:[%s84 + $0x390] sm:$0xff]
    %v341 = vld [vmem:[%s84 + $0x398] sm:$0xff]
    %v342 = vld [vmem:[%s84 + $0x3a0] sm:$0xff]
    %v343 = vld [vmem:[%s84 + $0x3a8] sm:$0xff]
    %v344 = vld [vmem:[%s84 + $0x3b0] sm:$0xff]
    %v345 = vld [vmem:[%s84 + $0x3b8] sm:$0xff]
    %v346 = vld [vmem:[%s84 + $0x3c0] sm:$0xff]
    %v347 = vld [vmem:[%s84 + $0x3c8] sm:$0xff]
    %v348 = vld [vmem:[%s84 + $0x3d0] sm:$0xff]
    %v349 = vld [vmem:[%s84 + $0x3d8] sm:$0xff]
    %v350 = vld [vmem:[%s84 + $0x3e0] sm:$0xff]
    %v351 = vld [vmem:[%s84 + $0x3e8] sm:$0xff]
    %v352 = vld [vmem:[%s84 + $0x3f0] sm:$0xff]
    %v353 = vld [vmem:[%s84 + $0x3f8] sm:$0xff]
    %v354 = vld [vmem:[#allocation2] sm:$0x3]
    %355 = vmatprep.subr.mxu0 0.0
    %356 = vmatpush1.msra.mxu0 %v241
    %357 = vmatprep.subr.mxu0 0.0
    %358 = vmatpush1.msra.mxu0 %v240
    %359 = vmatprep.subr.mxu0 0.0
    %360 = vmatpush1.msra.mxu0 %v239
    %361 = vmatprep.subr.mxu0 0.0
    %362 = vmatpush1.msra.mxu0 %v238
    %363 = vmatprep.subr.mxu0 0.0
    %364 = vmatpush1.msra.mxu0 %v237
    %365 = vmatprep.subr.mxu0 0.0
    %366 = vmatpush1.msra.mxu0 %v236
    %367 = vmatprep.subr.mxu0 0.0
    %368 = vmatpush1.msra.mxu0 %v235
    %369 = vmatprep.subr.mxu0 0.0
    %370 = vmatpush1.msra.mxu0 %v234
    %371 = vmatprep.subr.mxu0 0.0
    %372 = vmatpush1.msra.mxu0 %v233
    %373 = vmatprep.subr.mxu0 0.0
    %374 = vmatpush1.msra.mxu0 %v232
    %375 = vmatprep.subr.mxu0 0.0
    %376 = vmatpush1.msra.mxu0 %v231
    %377 = vmatprep.subr.mxu0 0.0
    %378 = vmatpush1.msra.mxu0 %v230
    %379 = vmatprep.subr.mxu0 0.0
    %380 = vmatpush1.msra.mxu0 %v229
    %381 = vmatprep.subr.mxu0 0.0
    %382 = vmatpush1.msra.mxu0 %v228
    %383 = vmatprep.subr.mxu0 0.0
    %384 = vmatpush1.msra.mxu0 %v227
    %385 = vmatprep.subr.mxu0 0.0
    %386 = vmatpush1.msra.mxu0 %v226
    %387 = vmatprep.subr.mxu0 0.0
    %388 = vmatpush2.msra.mxu0 %v257
    %389 = vmatprep.subr.mxu0 0.0
    %390 = vmatpush2.msra.mxu0 %v256
    %391 = vmatprep.subr.mxu0 0.0
    %392 = vmatpush2.msra.mxu0 %v255
    %393 = vmatprep.subr.mxu0 0.0
    %394 = vmatpush2.msra.mxu0 %v254
    %395 = vmatprep.subr.mxu0 0.0
    %396 = vmatpush2.msra.mxu0 %v253
    %397 = vmatprep.subr.mxu0 0.0
    %398 = vmatpush2.msra.mxu0 %v252
    %399 = vmatprep.subr.mxu0 0.0
    %400 = vmatpush2.msra.mxu0 %v251
    %401 = vmatprep.subr.mxu0 0.0
    %402 = vmatpush2.msra.mxu0 %v250
    %403 = vmatprep.subr.mxu0 0.0
    %404 = vmatpush2.msra.mxu0 %v249
    %405 = vmatprep.subr.mxu0 0.0
    %406 = vmatpush2.msra.mxu0 %v248
    %407 = vmatprep.subr.mxu0 0.0
    %408 = vmatpush2.msra.mxu0 %v247
    %409 = vmatprep.subr.mxu0 0.0
    %410 = vmatpush2.msra.mxu0 %v246
    %411 = vmatprep.subr.mxu0 0.0
    %412 = vmatpush2.msra.mxu0 %v245
    %413 = vmatprep.subr.mxu0 0.0
    %414 = vmatpush2.msra.mxu0 %v244
    %415 = vmatprep.subr.mxu0 0.0
    %416 = vmatpush2.msra.mxu0 %v243
    %417 = vmatprep.subr.mxu0 0.0
    %418 = vmatpush2.msra.mxu0 %v242
    %419 = vmatprep.mubr.f32.mxu0 %v219
    %420 = vmatmul.mubr.f32.gmra.mxu0 %v218
    %v421 = vpop.f32.mrf.mxu0
    %v422 = vadd.f32 0.0, %v421
    %v423 = vpop.f32.mrf.mxu0
    %424 = vdwg.mxu0
    %425 = vmatprep.subr.mxu0 0.0
    %426 = vmatpush1.msra.mxu0 %v273
    %427 = vmatprep.subr.mxu0 0.0
    %428 = vmatpush1.msra.mxu0 %v272
    %429 = vmatprep.subr.mxu0 0.0
    %430 = vmatpush1.msra.mxu0 %v271
    %431 = vmatprep.subr.mxu0 0.0
    %432 = vmatpush1.msra.mxu0 %v270
    %433 = vmatprep.subr.mxu0 0.0
    %434 = vmatpush1.msra.mxu0 %v269
    %435 = vmatprep.subr.mxu0 0.0
    %436 = vmatpush1.msra.mxu0 %v268
    %437 = vmatprep.subr.mxu0 0.0
    %438 = vmatpush1.msra.mxu0 %v267
    %439 = vmatprep.subr.mxu0 0.0
    %440 = vmatpush1.msra.mxu0 %v266
    %441 = vmatprep.subr.mxu0 0.0
    %442 = vmatpush1.msra.mxu0 %v265
    %443 = vmatprep.subr.mxu0 0.0
    %444 = vmatpush1.msra.mxu0 %v264
    %445 = vmatprep.subr.mxu0 0.0
    %446 = vmatpush1.msra.mxu0 %v263
    %447 = vmatprep.subr.mxu0 0.0
    %448 = vmatpush1.msra.mxu0 %v262
    %449 = vmatprep.subr.mxu0 0.0
    %450 = vmatpush1.msra.mxu0 %v261
    %451 = vmatprep.subr.mxu0 0.0
    %452 = vmatpush1.msra.mxu0 %v260
    %453 = vmatprep.subr.mxu0 0.0
    %454 = vmatpush1.msra.mxu0 %v259
    %455 = vmatprep.subr.mxu0 0.0
    %456 = vmatpush1.msra.mxu0 %v258
    %457 = vmatprep.subr.mxu0 0.0
    %458 = vmatpush2.msra.mxu0 %v289
    %459 = vmatprep.subr.mxu0 0.0
    %460 = vmatpush2.msra.mxu0 %v288
    %461 = vmatprep.subr.mxu0 0.0
    %462 = vmatpush2.msra.mxu0 %v287
    %463 = vmatprep.subr.mxu0 0.0
    %464 = vmatpush2.msra.mxu0 %v286
    %465 = vmatprep.subr.mxu0 0.0
    %466 = vmatpush2.msra.mxu0 %v285
    %467 = vmatprep.subr.mxu0 0.0
    %468 = vmatpush2.msra.mxu0 %v284
    %469 = vmatprep.subr.mxu0 0.0
    %470 = vmatpush2.msra.mxu0 %v283
    %471 = vmatprep.subr.mxu0 0.0
    %472 = vmatpush2.msra.mxu0 %v282
    %473 = vmatprep.subr.mxu0 0.0
    %474 = vmatpush2.msra.mxu0 %v281
    %475 = vmatprep.subr.mxu0 0.0
    %476 = vmatpush2.msra.mxu0 %v280
    %477 = vmatprep.subr.mxu0 0.0
    %478 = vmatpush2.msra.mxu0 %v279
    %479 = vmatprep.subr.mxu0 0.0
    %480 = vmatpush2.msra.mxu0 %v278
    %481 = vmatprep.subr.mxu0 0.0
    %482 = vmatpush2.msra.mxu0 %v277
    %483 = vmatprep.subr.mxu0 0.0
    %484 = vmatpush2.msra.mxu0 %v276
    %485 = vmatprep.subr.mxu0 0.0
    %486 = vmatpush2.msra.mxu0 %v275
    %487 = vmatprep.subr.mxu0 0.0
    %488 = vmatpush2.msra.mxu0 %v274
    %489 = vmatprep.mubr.f32.mxu0 %v221
    %490 = vmatmul.mubr.f32.gmra.mxu0 %v220
    %v491 = vpop.f32.mrf.mxu0
    %v492 = vadd.f32 %v422, %v491
    %v493 = vpop.f32.mrf.mxu0
    %494 = vdwg.mxu0
    %495 = vmatprep.subr.mxu0 0.0
    %496 = vmatpush1.msra.mxu0 %v305
    %497 = vmatprep.subr.mxu0 0.0
    %498 = vmatpush1.msra.mxu0 %v304
    %499 = vmatprep.subr.mxu0 0.0
    %500 = vmatpush1.msra.mxu0 %v303
    %501 = vmatprep.subr.mxu0 0.0
    %502 = vmatpush1.msra.mxu0 %v302
    %503 = vmatprep.subr.mxu0 0.0
    %504 = vmatpush1.msra.mxu0 %v301
    %505 = vmatprep.subr.mxu0 0.0
    %506 = vmatpush1.msra.mxu0 %v300
    %507 = vmatprep.subr.mxu0 0.0
    %508 = vmatpush1.msra.mxu0 %v299
    %509 = vmatprep.subr.mxu0 0.0
    %510 = vmatpush1.msra.mxu0 %v298
    %511 = vmatprep.subr.mxu0 0.0
    %512 = vmatpush1.msra.mxu0 %v297
    %513 = vmatprep.subr.mxu0 0.0
    %514 = vmatpush1.msra.mxu0 %v296
    %515 = vmatprep.subr.mxu0 0.0
    %516 = vmatpush1.msra.mxu0 %v295
    %517 = vmatprep.subr.mxu0 0.0
    %518 = vmatpush1.msra.mxu0 %v294
    %519 = vmatprep.subr.mxu0 0.0
    %520 = vmatpush1.msra.mxu0 %v293
    %521 = vmatprep.subr.mxu0 0.0
    %522 = vmatpush1.msra.mxu0 %v292
    %523 = vmatprep.subr.mxu0 0.0
    %524 = vmatpush1.msra.mxu0 %v291
    %525 = vmatprep.subr.mxu0 0.0
    %526 = vmatpush1.msra.mxu0 %v290
    %527 = vmatprep.subr.mxu0 0.0
    %528 = vmatpush2.msra.mxu0 %v321
    %529 = vmatprep.subr.mxu0 0.0
    %530 = vmatpush2.msra.mxu0 %v320
    %531 = vmatprep.subr.mxu0 0.0
    %532 = vmatpush2.msra.mxu0 %v319
    %533 = vmatprep.subr.mxu0 0.0
    %534 = vmatpush2.msra.mxu0 %v318
    %535 = vmatprep.subr.mxu0 0.0
    %536 = vmatpush2.msra.mxu0 %v317
    %537 = vmatprep.subr.mxu0 0.0
    %538 = vmatpush2.msra.mxu0 %v316
    %539 = vmatprep.subr.mxu0 0.0
    %540 = vmatpush2.msra.mxu0 %v315
    %541 = vmatprep.subr.mxu0 0.0
    %542 = vmatpush2.msra.mxu0 %v314
    %543 = vmatprep.subr.mxu0 0.0
    %544 = vmatpush2.msra.mxu0 %v313
    %545 = vmatprep.subr.mxu0 0.0
    %546 = vmatpush2.msra.mxu0 %v312
    %547 = vmatprep.subr.mxu0 0.0
    %548 = vmatpush2.msra.mxu0 %v311
    %549 = vmatprep.subr.mxu0 0.0
    %550 = vmatpush2.msra.mxu0 %v310
    %551 = vmatprep.subr.mxu0 0.0
    %552 = vmatpush2.msra.mxu0 %v309
    %553 = vmatprep.subr.mxu0 0.0
    %554 = vmatpush2.msra.mxu0 %v308
    %555 = vmatprep.subr.mxu0 0.0
    %556 = vmatpush2.msra.mxu0 %v307
    %557 = vmatprep.subr.mxu0 0.0
    %558 = vmatpush2.msra.mxu0 %v306
    %559 = vmatprep.mubr.f32.mxu0 %v223
    %560 = vmatmul.mubr.f32.gmra.mxu0 %v222
    %v561 = vpop.f32.mrf.mxu0
    %v562 = vadd.f32 %v492, %v561
    %v563 = vpop.f32.mrf.mxu0
    %564 = vdwg.mxu0
    %565 = vmatprep.subr.mxu0 0.0
    %566 = vmatpush1.msra.mxu0 %v337
    %567 = vmatprep.subr.mxu0 0.0
    %568 = vmatpush1.msra.mxu0 %v336
    %569 = vmatprep.subr.mxu0 0.0
    %570 = vmatpush1.msra.mxu0 %v335
    %571 = vmatprep.subr.mxu0 0.0
    %572 = vmatpush1.msra.mxu0 %v334
    %573 = vmatprep.subr.mxu0 0.0
    %574 = vmatpush1.msra.mxu0 %v333
    %575 = vmatprep.subr.mxu0 0.0
    %576 = vmatpush1.msra.mxu0 %v332
    %577 = vmatprep.subr.mxu0 0.0
    %578 = vmatpush1.msra.mxu0 %v331
    %579 = vmatprep.subr.mxu0 0.0
    %580 = vmatpush1.msra.mxu0 %v330
    %581 = vmatprep.subr.mxu0 0.0
    %582 = vmatpush1.msra.mxu0 %v329
    %583 = vmatprep.subr.mxu0 0.0
    %584 = vmatpush1.msra.mxu0 %v328
    %585 = vmatprep.subr.mxu0 0.0
    %586 = vmatpush1.msra.mxu0 %v327
    %587 = vmatprep.subr.mxu0 0.0
    %588 = vmatpush1.msra.mxu0 %v326
    %589 = vmatprep.subr.mxu0 0.0
    %590 = vmatpush1.msra.mxu0 %v325
    %591 = vmatprep.subr.mxu0 0.0
    %592 = vmatpush1.msra.mxu0 %v324
    %593 = vmatprep.subr.mxu0 0.0
    %594 = vmatpush1.msra.mxu0 %v323
    %595 = vmatprep.subr.mxu0 0.0
    %596 = vmatpush1.msra.mxu0 %v322
    %597 = vmatprep.subr.mxu0 0.0
    %598 = vmatpush2.msra.mxu0 %v353
    %599 = vmatprep.subr.mxu0 0.0
    %600 = vmatpush2.msra.mxu0 %v352
    %601 = vmatprep.subr.mxu0 0.0
    %602 = vmatpush2.msra.mxu0 %v351
    %603 = vmatprep.subr.mxu0 0.0
    %604 = vmatpush2.msra.mxu0 %v350
    %605 = vmatprep.subr.mxu0 0.0
    %606 = vmatpush2.msra.mxu0 %v349
    %607 = vmatprep.subr.mxu0 0.0
    %608 = vmatpush2.msra.mxu0 %v348
    %609 = vmatprep.subr.mxu0 0.0
    %610 = vmatpush2.msra.mxu0 %v347
    %611 = vmatprep.subr.mxu0 0.0
    %612 = vmatpush2.msra.mxu0 %v346
    %613 = vmatprep.subr.mxu0 0.0
    %614 = vmatpush2.msra.mxu0 %v345
    %615 = vmatprep.subr.mxu0 0.0
    %616 = vmatpush2.msra.mxu0 %v344
    %617 = vmatprep.subr.mxu0 0.0
    %618 = vmatpush2.msra.mxu0 %v343
    %619 = vmatprep.subr.mxu0 0.0
    %620 = vmatpush2.msra.mxu0 %v342
    %621 = vmatprep.subr.mxu0 0.0
    %622 = vmatpush2.msra.mxu0 %v341
    %623 = vmatprep.subr.mxu0 0.0
    %624 = vmatpush2.msra.mxu0 %v340
    %625 = vmatprep.subr.mxu0 0.0
    %626 = vmatpush2.msra.mxu0 %v339
    %627 = vmatprep.subr.mxu0 0.0
    %628 = vmatpush2.msra.mxu0 %v338
    %629 = vmatprep.mubr.f32.mxu0 %v225
    %630 = vmatmul.mubr.f32.gmra.mxu0 %v224
    %v631 = vpop.f32.mrf.mxu0
    %v632 = vadd.f32 %v562, %v631
    %v633 = vpop.f32.mrf.mxu0
    %634 = vdwg.mxu0
    %v635 = vadd.f32 %v354, %v632
    %vm636 = vcmask 254976
    %637 = vst.msk [vmem:[#allocation2] sm:$0x3] %vm636, %v635
    %v638 = vld [vmem:[#allocation4] sm:$0xff]
    %v639 = vld [vmem:[#allocation4 + $0x8] sm:$0xff]
    %v640 = vld [vmem:[#allocation4 + $0x10] sm:$0xff]
    %v641 = vld [vmem:[#allocation4 + $0x18] sm:$0xff]
    %642 = vxpose.xlu0.b32.start [1/16] %v226, 128
    %643 = vxpose.xlu0.b32.cont [2/16] %v227, 128
    %644 = vxpose.xlu0.b32.cont [3/16] %v228, 128
    %645 = vxpose.xlu0.b32.cont [4/16] %v229, 128
    %646 = vxpose.xlu0.b32.cont [5/16] %v230, 128
    %647 = vxpose.xlu0.b32.cont [6/16] %v231, 128
    %648 = vxpose.xlu0.b32.cont [7/16] %v232, 128
    %649 = vxpose.xlu0.b32.cont [8/16] %v233, 128
    %650 = vxpose.xlu0.b32.cont [9/16] %v234, 128
    %651 = vxpose.xlu0.b32.cont [10/16] %v235, 128
    %652 = vxpose.xlu0.b32.cont [11/16] %v236, 128
    %653 = vxpose.xlu0.b32.cont [12/16] %v237, 128
    %654 = vxpose.xlu0.b32.cont [13/16] %v238, 128
    %655 = vxpose.xlu0.b32.cont [14/16] %v239, 128
    %656 = vxpose.xlu0.b32.cont [15/16] %v240, 128
    %657 = vxpose.xlu0.b32.end [16/16] %v241, 128
    %v658 = vpop.trf.xlu0
    %v659 = vpop.trf.xlu0
    %v660 = vpop.trf.xlu0
    %v661 = vpop.trf.xlu0
    %v662 = vpop.trf.xlu0
    %v663 = vpop.trf.xlu0
    %v664 = vpop.trf.xlu0
    %v665 = vpop.trf.xlu0
    %v666 = vpop.trf.xlu0
    %v667 = vpop.trf.xlu0
    %v668 = vpop.trf.xlu0
    %v669 = vpop.trf.xlu0
    %v670 = vpop.trf.xlu0
    %v671 = vpop.trf.xlu0
    %v672 = vpop.trf.xlu0
    %v673 = vpop.trf.xlu0
    %674 = vxpose.xlu0.b32.start [1/16] %v242, 128
    %675 = vxpose.xlu0.b32.cont [2/16] %v243, 128
    %676 = vxpose.xlu0.b32.cont [3/16] %v244, 128
    %677 = vxpose.xlu0.b32.cont [4/16] %v245, 128
    %678 = vxpose.xlu0.b32.cont [5/16] %v246, 128
    %679 = vxpose.xlu0.b32.cont [6/16] %v247, 128
    %680 = vxpose.xlu0.b32.cont [7/16] %v248, 128
    %681 = vxpose.xlu0.b32.cont [8/16] %v249, 128
    %682 = vxpose.xlu0.b32.cont [9/16] %v250, 128
    %683 = vxpose.xlu0.b32.cont [10/16] %v251, 128
    %684 = vxpose.xlu0.b32.cont [11/16] %v252, 128
    %685 = vxpose.xlu0.b32.cont [12/16] %v253, 128
    %686 = vxpose.xlu0.b32.cont [13/16] %v254, 128
    %687 = vxpose.xlu0.b32.cont [14/16] %v255, 128
    %688 = vxpose.xlu0.b32.cont [15/16] %v256, 128
    %689 = vxpose.xlu0.b32.end [16/16] %v257, 128
    %v690 = vpop.trf.xlu0
    %v691 = vpop.trf.xlu0
    %v692 = vpop.trf.xlu0
    %v693 = vpop.trf.xlu0
    %v694 = vpop.trf.xlu0
    %v695 = vpop.trf.xlu0
    %v696 = vpop.trf.xlu0
    %v697 = vpop.trf.xlu0
    %v698 = vpop.trf.xlu0
    %v699 = vpop.trf.xlu0
    %v700 = vpop.trf.xlu0
    %v701 = vpop.trf.xlu0
    %v702 = vpop.trf.xlu0
    %v703 = vpop.trf.xlu0
    %v704 = vpop.trf.xlu0
    %v705 = vpop.trf.xlu0
    %706 = vxpose.xlu0.b32.start [1/16] %v258, 128
    %707 = vxpose.xlu0.b32.cont [2/16] %v259, 128
    %708 = vxpose.xlu0.b32.cont [3/16] %v260, 128
    %709 = vxpose.xlu0.b32.cont [4/16] %v261, 128
    %710 = vxpose.xlu0.b32.cont [5/16] %v262, 128
    %711 = vxpose.xlu0.b32.cont [6/16] %v263, 128
    %712 = vxpose.xlu0.b32.cont [7/16] %v264, 128
    %713 = vxpose.xlu0.b32.cont [8/16] %v265, 128
    %714 = vxpose.xlu0.b32.cont [9/16] %v266, 128
    %715 = vxpose.xlu0.b32.cont [10/16] %v267, 128
    %716 = vxpose.xlu0.b32.cont [11/16] %v268, 128
    %717 = vxpose.xlu0.b32.cont [12/16] %v269, 128
    %718 = vxpose.xlu0.b32.cont [13/16] %v270, 128
    %719 = vxpose.xlu0.b32.cont [14/16] %v271, 128
    %720 = vxpose.xlu0.b32.cont [15/16] %v272, 128
    %721 = vxpose.xlu0.b32.end [16/16] %v273, 128
    %v722 = vpop.trf.xlu0
    %v723 = vpop.trf.xlu0
    %v724 = vpop.trf.xlu0
    %v725 = vpop.trf.xlu0
    %v726 = vpop.trf.xlu0
    %v727 = vpop.trf.xlu0
    %v728 = vpop.trf.xlu0
    %v729 = vpop.trf.xlu0
    %v730 = vpop.trf.xlu0
    %v731 = vpop.trf.xlu0
    %v732 = vpop.trf.xlu0
    %v733 = vpop.trf.xlu0
    %v734 = vpop.trf.xlu0
    %v735 = vpop.trf.xlu0
    %v736 = vpop.trf.xlu0
    %v737 = vpop.trf.xlu0
    %738 = vxpose.xlu0.b32.start [1/16] %v274, 128
    %739 = vxpose.xlu0.b32.cont [2/16] %v275, 128
    %740 = vxpose.xlu0.b32.cont [3/16] %v276, 128
    %741 = vxpose.xlu0.b32.cont [4/16] %v277, 128
    %742 = vxpose.xlu0.b32.cont [5/16] %v278, 128
    %743 = vxpose.xlu0.b32.cont [6/16] %v279, 128
    %744 = vxpose.xlu0.b32.cont [7/16] %v280, 128
    %745 = vxpose.xlu0.b32.cont [8/16] %v281, 128
    %746 = vxpose.xlu0.b32.cont [9/16] %v282, 128
    %747 = vxpose.xlu0.b32.cont [10/16] %v283, 128
    %748 = vxpose.xlu0.b32.cont [11/16] %v284, 128
    %749 = vxpose.xlu0.b32.cont [12/16] %v285, 128
    %750 = vxpose.xlu0.b32.cont [13/16] %v286, 128
    %751 = vxpose.xlu0.b32.cont [14/16] %v287, 128
    %752 = vxpose.xlu0.b32.cont [15/16] %v288, 128
    %753 = vxpose.xlu0.b32.end [16/16] %v289, 128
    %v754 = vpop.trf.xlu0
    %v755 = vpop.trf.xlu0
    %v756 = vpop.trf.xlu0
    %v757 = vpop.trf.xlu0
    %v758 = vpop.trf.xlu0
    %v759 = vpop.trf.xlu0
    %v760 = vpop.trf.xlu0
    %v761 = vpop.trf.xlu0
    %v762 = vpop.trf.xlu0
    %v763 = vpop.trf.xlu0
    %v764 = vpop.trf.xlu0
    %v765 = vpop.trf.xlu0
    %v766 = vpop.trf.xlu0
    %v767 = vpop.trf.xlu0
    %v768 = vpop.trf.xlu0
    %v769 = vpop.trf.xlu0
    %770 = vxpose.xlu0.b32.start [1/16] %v290, 128
    %771 = vxpose.xlu0.b32.cont [2/16] %v291, 128
    %772 = vxpose.xlu0.b32.cont [3/16] %v292, 128
    %773 = vxpose.xlu0.b32.cont [4/16] %v293, 128
    %774 = vxpose.xlu0.b32.cont [5/16] %v294, 128
    %775 = vxpose.xlu0.b32.cont [6/16] %v295, 128
    %776 = vxpose.xlu0.b32.cont [7/16] %v296, 128
    %777 = vxpose.xlu0.b32.cont [8/16] %v297, 128
    %778 = vxpose.xlu0.b32.cont [9/16] %v298, 128
    %779 = vxpose.xlu0.b32.cont [10/16] %v299, 128
    %780 = vxpose.xlu0.b32.cont [11/16] %v300, 128
    %781 = vxpose.xlu0.b32.cont [12/16] %v301, 128
    %782 = vxpose.xlu0.b32.cont [13/16] %v302, 128
    %783 = vxpose.xlu0.b32.cont [14/16] %v303, 128
    %784 = vxpose.xlu0.b32.cont [15/16] %v304, 128
    %785 = vxpose.xlu0.b32.end [16/16] %v305, 128
    %v786 = vpop.trf.xlu0
    %v787 = vpop.trf.xlu0
    %v788 = vpop.trf.xlu0
    %v789 = vpop.trf.xlu0
    %v790 = vpop.trf.xlu0
    %v791 = vpop.trf.xlu0
    %v792 = vpop.trf.xlu0
    %v793 = vpop.trf.xlu0
    %v794 = vpop.trf.xlu0
    %v795 = vpop.trf.xlu0
    %v796 = vpop.trf.xlu0
    %v797 = vpop.trf.xlu0
    %v798 = vpop.trf.xlu0
    %v799 = vpop.trf.xlu0
    %v800 = vpop.trf.xlu0
    %v801 = vpop.trf.xlu0
    %802 = vxpose.xlu0.b32.start [1/16] %v306, 128
    %803 = vxpose.xlu0.b32.cont [2/16] %v307, 128
    %804 = vxpose.xlu0.b32.cont [3/16] %v308, 128
    %805 = vxpose.xlu0.b32.cont [4/16] %v309, 128
    %806 = vxpose.xlu0.b32.cont [5/16] %v310, 128
    %807 = vxpose.xlu0.b32.cont [6/16] %v311, 128
    %808 = vxpose.xlu0.b32.cont [7/16] %v312, 128
    %809 = vxpose.xlu0.b32.cont [8/16] %v313, 128
    %810 = vxpose.xlu0.b32.cont [9/16] %v314, 128
    %811 = vxpose.xlu0.b32.cont [10/16] %v315, 128
    %812 = vxpose.xlu0.b32.cont [11/16] %v316, 128
    %813 = vxpose.xlu0.b32.cont [12/16] %v317, 128
    %814 = vxpose.xlu0.b32.cont [13/16] %v318, 128
    %815 = vxpose.xlu0.b32.cont [14/16] %v319, 128
    %816 = vxpose.xlu0.b32.cont [15/16] %v320, 128
    %817 = vxpose.xlu0.b32.end [16/16] %v321, 128
    %v818 = vpop.trf.xlu0
    %v819 = vpop.trf.xlu0
    %v820 = vpop.trf.xlu0
    %v821 = vpop.trf.xlu0
    %v822 = vpop.trf.xlu0
    %v823 = vpop.trf.xlu0
    %v824 = vpop.trf.xlu0
    %v825 = vpop.trf.xlu0
    %v826 = vpop.trf.xlu0
    %v827 = vpop.trf.xlu0
    %v828 = vpop.trf.xlu0
    %v829 = vpop.trf.xlu0
    %v830 = vpop.trf.xlu0
    %v831 = vpop.trf.xlu0
    %v832 = vpop.trf.xlu0
    %v833 = vpop.trf.xlu0
    %834 = vxpose.xlu0.b32.start [1/16] %v322, 128
    %835 = vxpose.xlu0.b32.cont [2/16] %v323, 128
    %836 = vxpose.xlu0.b32.cont [3/16] %v324, 128
    %837 = vxpose.xlu0.b32.cont [4/16] %v325, 128
    %838 = vxpose.xlu0.b32.cont [5/16] %v326, 128
    %839 = vxpose.xlu0.b32.cont [6/16] %v327, 128
    %840 = vxpose.xlu0.b32.cont [7/16] %v328, 128
    %841 = vxpose.xlu0.b32.cont [8/16] %v329, 128
    %842 = vxpose.xlu0.b32.cont [9/16] %v330, 128
    %843 = vxpose.xlu0.b32.cont [10/16] %v331, 128
    %844 = vxpose.xlu0.b32.cont [11/16] %v332, 128
    %845 = vxpose.xlu0.b32.cont [12/16] %v333, 128
    %846 = vxpose.xlu0.b32.cont [13/16] %v334, 128
    %847 = vxpose.xlu0.b32.cont [14/16] %v335, 128
    %848 = vxpose.xlu0.b32.cont [15/16] %v336, 128
    %849 = vxpose.xlu0.b32.end [16/16] %v337, 128
    %v850 = vpop.trf.xlu0
    %v851 = vpop.trf.xlu0
    %v852 = vpop.trf.xlu0
    %v853 = vpop.trf.xlu0
    %v854 = vpop.trf.xlu0
    %v855 = vpop.trf.xlu0
    %v856 = vpop.trf.xlu0
    %v857 = vpop.trf.xlu0
    %v858 = vpop.trf.xlu0
    %v859 = vpop.trf.xlu0
    %v860 = vpop.trf.xlu0
    %v861 = vpop.trf.xlu0
    %v862 = vpop.trf.xlu0
    %v863 = vpop.trf.xlu0
    %v864 = vpop.trf.xlu0
    %v865 = vpop.trf.xlu0
    %866 = vxpose.xlu0.b32.start [1/16] %v338, 128
    %867 = vxpose.xlu0.b32.cont [2/16] %v339, 128
    %868 = vxpose.xlu0.b32.cont [3/16] %v340, 128
    %869 = vxpose.xlu0.b32.cont [4/16] %v341, 128
    %870 = vxpose.xlu0.b32.cont [5/16] %v342, 128
    %871 = vxpose.xlu0.b32.cont [6/16] %v343, 128
    %872 = vxpose.xlu0.b32.cont [7/16] %v344, 128
    %873 = vxpose.xlu0.b32.cont [8/16] %v345, 128
    %874 = vxpose.xlu0.b32.cont [9/16] %v346, 128
    %875 = vxpose.xlu0.b32.cont [10/16] %v347, 128
    %876 = vxpose.xlu0.b32.cont [11/16] %v348, 128
    %877 = vxpose.xlu0.b32.cont [12/16] %v349, 128
    %878 = vxpose.xlu0.b32.cont [13/16] %v350, 128
    %879 = vxpose.xlu0.b32.cont [14/16] %v351, 128
    %880 = vxpose.xlu0.b32.cont [15/16] %v352, 128
    %881 = vxpose.xlu0.b32.end [16/16] %v353, 128
    %v882 = vpop.trf.xlu0
    %v883 = vpop.trf.xlu0
    %v884 = vpop.trf.xlu0
    %v885 = vpop.trf.xlu0
    %v886 = vpop.trf.xlu0
    %v887 = vpop.trf.xlu0
    %v888 = vpop.trf.xlu0
    %v889 = vpop.trf.xlu0
    %v890 = vpop.trf.xlu0
    %v891 = vpop.trf.xlu0
    %v892 = vpop.trf.xlu0
    %v893 = vpop.trf.xlu0
    %v894 = vpop.trf.xlu0
    %v895 = vpop.trf.xlu0
    %v896 = vpop.trf.xlu0
    %v897 = vpop.trf.xlu0
    %898 = vmatprep.subr.mxu0 0.0
    %899 = vmatpush1.msra.mxu0 %v241
    %900 = vmatprep.subr.mxu0 0.0
    %901 = vmatpush1.msra.mxu0 %v240
    %902 = vmatprep.subr.mxu0 0.0
    %903 = vmatpush1.msra.mxu0 %v239
    %904 = vmatprep.subr.mxu0 0.0
    %905 = vmatpush1.msra.mxu0 %v238
    %906 = vmatprep.subr.mxu0 0.0
    %907 = vmatpush1.msra.mxu0 %v237
    %908 = vmatprep.subr.mxu0 0.0
    %909 = vmatpush1.msra.mxu0 %v236
    %910 = vmatprep.subr.mxu0 0.0
    %911 = vmatpush1.msra.mxu0 %v235
    %912 = vmatprep.subr.mxu0 0.0
    %913 = vmatpush1.msra.mxu0 %v234
    %914 = vmatprep.subr.mxu0 0.0
    %915 = vmatpush1.msra.mxu0 %v233
    %916 = vmatprep.subr.mxu0 0.0
    %917 = vmatpush1.msra.mxu0 %v232
    %918 = vmatprep.subr.mxu0 0.0
    %919 = vmatpush1.msra.mxu0 %v231
    %920 = vmatprep.subr.mxu0 0.0
    %921 = vmatpush1.msra.mxu0 %v230
    %922 = vmatprep.subr.mxu0 0.0
    %923 = vmatpush1.msra.mxu0 %v229
    %924 = vmatprep.subr.mxu0 0.0
    %925 = vmatpush1.msra.mxu0 %v228
    %926 = vmatprep.subr.mxu0 0.0
    %927 = vmatpush1.msra.mxu0 %v227
    %928 = vmatprep.subr.mxu0 0.0
    %929 = vmatpush1.msra.mxu0 %v226
    %930 = vmatprep.subr.mxu0 0.0
    %931 = vmatpush2.msra.mxu0 %v257
    %932 = vmatprep.subr.mxu0 0.0
    %933 = vmatpush2.msra.mxu0 %v256
    %934 = vmatprep.subr.mxu0 0.0
    %935 = vmatpush2.msra.mxu0 %v255
    %936 = vmatprep.subr.mxu0 0.0
    %937 = vmatpush2.msra.mxu0 %v254
    %938 = vmatprep.subr.mxu0 0.0
    %939 = vmatpush2.msra.mxu0 %v253
    %940 = vmatprep.subr.mxu0 0.0
    %941 = vmatpush2.msra.mxu0 %v252
    %942 = vmatprep.subr.mxu0 0.0
    %943 = vmatpush2.msra.mxu0 %v251
    %944 = vmatprep.subr.mxu0 0.0
    %945 = vmatpush2.msra.mxu0 %v250
    %946 = vmatprep.subr.mxu0 0.0
    %947 = vmatpush2.msra.mxu0 %v249
    %948 = vmatprep.subr.mxu0 0.0
    %949 = vmatpush2.msra.mxu0 %v248
    %950 = vmatprep.subr.mxu0 0.0
    %951 = vmatpush2.msra.mxu0 %v247
    %952 = vmatprep.subr.mxu0 0.0
    %953 = vmatpush2.msra.mxu0 %v246
    %954 = vmatprep.subr.mxu0 0.0
    %955 = vmatpush2.msra.mxu0 %v245
    %956 = vmatprep.subr.mxu0 0.0
    %957 = vmatpush2.msra.mxu0 %v244
    %958 = vmatprep.subr.mxu0 0.0
    %959 = vmatpush2.msra.mxu0 %v243
    %960 = vmatprep.subr.mxu0 0.0
    %961 = vmatpush2.msra.mxu0 %v242
    %962 = vmatprep.mubr.f32.mxu0 %v690
    %963 = vmatmul.mubr.f32.gmra.mxu0 %v658
    %v964 = vpop.f32.mrf.mxu0
    %v965 = vadd.f32 0.0, %v964
    %v966 = vpop.f32.mrf.mxu0
    %967 = vmatprep.mubr.f32.mxu0 %v691
    %968 = vmatmul.mubr.f32.gmra.mxu0 %v659
    %v969 = vpop.f32.mrf.mxu0
    %v970 = vadd.f32 0.0, %v969
    %v971 = vpop.f32.mrf.mxu0
    %972 = vmatprep.mubr.f32.mxu0 %v692
    %973 = vmatmul.mubr.f32.gmra.mxu0 %v660
    %v974 = vpop.f32.mrf.mxu0
    %v975 = vadd.f32 0.0, %v974
    %v976 = vpop.f32.mrf.mxu0
    %977 = vmatprep.mubr.f32.mxu0 %v693
    %978 = vmatmul.mubr.f32.gmra.mxu0 %v661
    %v979 = vpop.f32.mrf.mxu0
    %v980 = vadd.f32 0.0, %v979
    %v981 = vpop.f32.mrf.mxu0
    %982 = vdwg.mxu0
    %983 = vmatprep.subr.mxu0 0.0
    %984 = vmatpush1.msra.mxu0 %v273
    %985 = vmatprep.subr.mxu0 0.0
    %986 = vmatpush1.msra.mxu0 %v272
    %987 = vmatprep.subr.mxu0 0.0
    %988 = vmatpush1.msra.mxu0 %v271
    %989 = vmatprep.subr.mxu0 0.0
    %990 = vmatpush1.msra.mxu0 %v270
    %991 = vmatprep.subr.mxu0 0.0
    %992 = vmatpush1.msra.mxu0 %v269
    %993 = vmatprep.subr.mxu0 0.0
    %994 = vmatpush1.msra.mxu0 %v268
    %995 = vmatprep.subr.mxu0 0.0
    %996 = vmatpush1.msra.mxu0 %v267
    %997 = vmatprep.subr.mxu0 0.0
    %998 = vmatpush1.msra.mxu0 %v266
    %999 = vmatprep.subr.mxu0 0.0
    %1000 = vmatpush1.msra.mxu0 %v265
    %1001 = vmatprep.subr.mxu0 0.0
    %1002 = vmatpush1.msra.mxu0 %v264
    %1003 = vmatprep.subr.mxu0 0.0
    %1004 = vmatpush1.msra.mxu0 %v263
    %1005 = vmatprep.subr.mxu0 0.0
    %1006 = vmatpush1.msra.mxu0 %v262
    %1007 = vmatprep.subr.mxu0 0.0
    %1008 = vmatpush1.msra.mxu0 %v261
    %1009 = vmatprep.subr.mxu0 0.0
    %1010 = vmatpush1.msra.mxu0 %v260
    %1011 = vmatprep.subr.mxu0 0.0
    %1012 = vmatpush1.msra.mxu0 %v259
    %1013 = vmatprep.subr.mxu0 0.0
    %1014 = vmatpush1.msra.mxu0 %v258
    %1015 = vmatprep.subr.mxu0 0.0
    %1016 = vmatpush2.msra.mxu0 %v289
    %1017 = vmatprep.subr.mxu0 0.0
    %1018 = vmatpush2.msra.mxu0 %v288
    %1019 = vmatprep.subr.mxu0 0.0
    %1020 = vmatpush2.msra.mxu0 %v287
    %1021 = vmatprep.subr.mxu0 0.0
    %1022 = vmatpush2.msra.mxu0 %v286
    %1023 = vmatprep.subr.mxu0 0.0
    %1024 = vmatpush2.msra.mxu0 %v285
    %1025 = vmatprep.subr.mxu0 0.0
    %1026 = vmatpush2.msra.mxu0 %v284
    %1027 = vmatprep.subr.mxu0 0.0
    %1028 = vmatpush2.msra.mxu0 %v283
    %1029 = vmatprep.subr.mxu0 0.0
    %1030 = vmatpush2.msra.mxu0 %v282
    %1031 = vmatprep.subr.mxu0 0.0
    %1032 = vmatpush2.msra.mxu0 %v281
    %1033 = vmatprep.subr.mxu0 0.0
    %1034 = vmatpush2.msra.mxu0 %v280
    %1035 = vmatprep.subr.mxu0 0.0
    %1036 = vmatpush2.msra.mxu0 %v279
    %1037 = vmatprep.subr.mxu0 0.0
    %1038 = vmatpush2.msra.mxu0 %v278
    %1039 = vmatprep.subr.mxu0 0.0
    %1040 = vmatpush2.msra.mxu0 %v277
    %1041 = vmatprep.subr.mxu0 0.0
    %1042 = vmatpush2.msra.mxu0 %v276
    %1043 = vmatprep.subr.mxu0 0.0
    %1044 = vmatpush2.msra.mxu0 %v275
    %1045 = vmatprep.subr.mxu0 0.0
    %1046 = vmatpush2.msra.mxu0 %v274
    %1047 = vmatprep.mubr.f32.mxu0 %v754
    %1048 = vmatmul.mubr.f32.gmra.mxu0 %v722
    %v1049 = vpop.f32.mrf.mxu0
    %v1050 = vadd.f32 %v965, %v1049
    %v1051 = vpop.f32.mrf.mxu0
    %1052 = vmatprep.mubr.f32.mxu0 %v755
    %1053 = vmatmul.mubr.f32.gmra.mxu0 %v723
    %v1054 = vpop.f32.mrf.mxu0
    %v1055 = vadd.f32 %v970, %v1054
    %v1056 = vpop.f32.mrf.mxu0
    %1057 = vmatprep.mubr.f32.mxu0 %v756
    %1058 = vmatmul.mubr.f32.gmra.mxu0 %v724
    %v1059 = vpop.f32.mrf.mxu0
    %v1060 = vadd.f32 %v975, %v1059
    %v1061 = vpop.f32.mrf.mxu0
    %1062 = vmatprep.mubr.f32.mxu0 %v757
    %1063 = vmatmul.mubr.f32.gmra.mxu0 %v725
    %v1064 = vpop.f32.mrf.mxu0
    %v1065 = vadd.f32 %v980, %v1064
    %v1066 = vpop.f32.mrf.mxu0
    %1067 = vdwg.mxu0
    %1068 = vmatprep.subr.mxu0 0.0
    %1069 = vmatpush1.msra.mxu0 %v305
    %1070 = vmatprep.subr.mxu0 0.0
    %1071 = vmatpush1.msra.mxu0 %v304
    %1072 = vmatprep.subr.mxu0 0.0
    %1073 = vmatpush1.msra.mxu0 %v303
    %1074 = vmatprep.subr.mxu0 0.0
    %1075 = vmatpush1.msra.mxu0 %v302
    %1076 = vmatprep.subr.mxu0 0.0
    %1077 = vmatpush1.msra.mxu0 %v301
    %1078 = vmatprep.subr.mxu0 0.0
    %1079 = vmatpush1.msra.mxu0 %v300
    %1080 = vmatprep.subr.mxu0 0.0
    %1081 = vmatpush1.msra.mxu0 %v299
    %1082 = vmatprep.subr.mxu0 0.0
    %1083 = vmatpush1.msra.mxu0 %v298
    %1084 = vmatprep.subr.mxu0 0.0
    %1085 = vmatpush1.msra.mxu0 %v297
    %1086 = vmatprep.subr.mxu0 0.0
    %1087 = vmatpush1.msra.mxu0 %v296
    %1088 = vmatprep.subr.mxu0 0.0
    %1089 = vmatpush1.msra.mxu0 %v295
    %1090 = vmatprep.subr.mxu0 0.0
    %1091 = vmatpush1.msra.mxu0 %v294
    %1092 = vmatprep.subr.mxu0 0.0
    %1093 = vmatpush1.msra.mxu0 %v293
    %1094 = vmatprep.subr.mxu0 0.0
    %1095 = vmatpush1.msra.mxu0 %v292
    %1096 = vmatprep.subr.mxu0 0.0
    %1097 = vmatpush1.msra.mxu0 %v291
    %1098 = vmatprep.subr.mxu0 0.0
    %1099 = vmatpush1.msra.mxu0 %v290
    %1100 = vmatprep.subr.mxu0 0.0
    %1101 = vmatpush2.msra.mxu0 %v321
    %1102 = vmatprep.subr.mxu0 0.0
    %1103 = vmatpush2.msra.mxu0 %v320
    %1104 = vmatprep.subr.mxu0 0.0
    %1105 = vmatpush2.msra.mxu0 %v319
    %1106 = vmatprep.subr.mxu0 0.0
    %1107 = vmatpush2.msra.mxu0 %v318
    %1108 = vmatprep.subr.mxu0 0.0
    %1109 = vmatpush2.msra.mxu0 %v317
    %1110 = vmatprep.subr.mxu0 0.0
    %1111 = vmatpush2.msra.mxu0 %v316
    %1112 = vmatprep.subr.mxu0 0.0
    %1113 = vmatpush2.msra.mxu0 %v315
    %1114 = vmatprep.subr.mxu0 0.0
    %1115 = vmatpush2.msra.mxu0 %v314
    %1116 = vmatprep.subr.mxu0 0.0
    %1117 = vmatpush2.msra.mxu0 %v313
    %1118 = vmatprep.subr.mxu0 0.0
    %1119 = vmatpush2.msra.mxu0 %v312
    %1120 = vmatprep.subr.mxu0 0.0
    %1121 = vmatpush2.msra.mxu0 %v311
    %1122 = vmatprep.subr.mxu0 0.0
    %1123 = vmatpush2.msra.mxu0 %v310
    %1124 = vmatprep.subr.mxu0 0.0
    %1125 = vmatpush2.msra.mxu0 %v309
    %1126 = vmatprep.subr.mxu0 0.0
    %1127 = vmatpush2.msra.mxu0 %v308
    %1128 = vmatprep.subr.mxu0 0.0
    %1129 = vmatpush2.msra.mxu0 %v307
    %1130 = vmatprep.subr.mxu0 0.0
    %1131 = vmatpush2.msra.mxu0 %v306
    %1132 = vmatprep.mubr.f32.mxu0 %v818
    %1133 = vmatmul.mubr.f32.gmra.mxu0 %v786
    %v1134 = vpop.f32.mrf.mxu0
    %v1135 = vadd.f32 %v1050, %v1134
    %v1136 = vpop.f32.mrf.mxu0
    %1137 = vmatprep.mubr.f32.mxu0 %v819
    %1138 = vmatmul.mubr.f32.gmra.mxu0 %v787
    %v1139 = vpop.f32.mrf.mxu0
    %v1140 = vadd.f32 %v1055, %v1139
    %v1141 = vpop.f32.mrf.mxu0
    %1142 = vmatprep.mubr.f32.mxu0 %v820
    %1143 = vmatmul.mubr.f32.gmra.mxu0 %v788
    %v1144 = vpop.f32.mrf.mxu0
    %v1145 = vadd.f32 %v1060, %v1144
    %v1146 = vpop.f32.mrf.mxu0
    %1147 = vmatprep.mubr.f32.mxu0 %v821
    %1148 = vmatmul.mubr.f32.gmra.mxu0 %v789
    %v1149 = vpop.f32.mrf.mxu0
    %v1150 = vadd.f32 %v1065, %v1149
    %v1151 = vpop.f32.mrf.mxu0
    %1152 = vdwg.mxu0
    %1153 = vmatprep.subr.mxu0 0.0
    %1154 = vmatpush1.msra.mxu0 %v337
    %1155 = vmatprep.subr.mxu0 0.0
    %1156 = vmatpush1.msra.mxu0 %v336
    %1157 = vmatprep.subr.mxu0 0.0
    %1158 = vmatpush1.msra.mxu0 %v335
    %1159 = vmatprep.subr.mxu0 0.0
    %1160 = vmatpush1.msra.mxu0 %v334
    %1161 = vmatprep.subr.mxu0 0.0
    %1162 = vmatpush1.msra.mxu0 %v333
    %1163 = vmatprep.subr.mxu0 0.0
    %1164 = vmatpush1.msra.mxu0 %v332
    %1165 = vmatprep.subr.mxu0 0.0
    %1166 = vmatpush1.msra.mxu0 %v331
    %1167 = vmatprep.subr.mxu0 0.0
    %1168 = vmatpush1.msra.mxu0 %v330
    %1169 = vmatprep.subr.mxu0 0.0
    %1170 = vmatpush1.msra.mxu0 %v329
    %1171 = vmatprep.subr.mxu0 0.0
    %1172 = vmatpush1.msra.mxu0 %v328
    %1173 = vmatprep.subr.mxu0 0.0
    %1174 = vmatpush1.msra.mxu0 %v327
    %1175 = vmatprep.subr.mxu0 0.0
    %1176 = vmatpush1.msra.mxu0 %v326
    %1177 = vmatprep.subr.mxu0 0.0
    %1178 = vmatpush1.msra.mxu0 %v325
    %1179 = vmatprep.subr.mxu0 0.0
    %1180 = vmatpush1.msra.mxu0 %v324
    %1181 = vmatprep.subr.mxu0 0.0
    %1182 = vmatpush1.msra.mxu0 %v323
    %1183 = vmatprep.subr.mxu0 0.0
    %1184 = vmatpush1.msra.mxu0 %v322
    %1185 = vmatprep.subr.mxu0 0.0
    %1186 = vmatpush2.msra.mxu0 %v353
    %1187 = vmatprep.subr.mxu0 0.0
    %1188 = vmatpush2.msra.mxu0 %v352
    %1189 = vmatprep.subr.mxu0 0.0
    %1190 = vmatpush2.msra.mxu0 %v351
    %1191 = vmatprep.subr.mxu0 0.0
    %1192 = vmatpush2.msra.mxu0 %v350
    %1193 = vmatprep.subr.mxu0 0.0
    %1194 = vmatpush2.msra.mxu0 %v349
    %1195 = vmatprep.subr.mxu0 0.0
    %1196 = vmatpush2.msra.mxu0 %v348
    %1197 = vmatprep.subr.mxu0 0.0
    %1198 = vmatpush2.msra.mxu0 %v347
    %1199 = vmatprep.subr.mxu0 0.0
    %1200 = vmatpush2.msra.mxu0 %v346
    %1201 = vmatprep.subr.mxu0 0.0
    %1202 = vmatpush2.msra.mxu0 %v345
    %1203 = vmatprep.subr.mxu0 0.0
    %1204 = vmatpush2.msra.mxu0 %v344
    %1205 = vmatprep.subr.mxu0 0.0
    %1206 = vmatpush2.msra.mxu0 %v343
    %1207 = vmatprep.subr.mxu0 0.0
    %1208 = vmatpush2.msra.mxu0 %v342
    %1209 = vmatprep.subr.mxu0 0.0
    %1210 = vmatpush2.msra.mxu0 %v341
    %1211 = vmatprep.subr.mxu0 0.0
    %1212 = vmatpush2.msra.mxu0 %v340
    %1213 = vmatprep.subr.mxu0 0.0
    %1214 = vmatpush2.msra.mxu0 %v339
    %1215 = vmatprep.subr.mxu0 0.0
    %1216 = vmatpush2.msra.mxu0 %v338
    %1217 = vmatprep.mubr.f32.mxu0 %v882
    %1218 = vmatmul.mubr.f32.gmra.mxu0 %v850
    %v1219 = vpop.f32.mrf.mxu0
    %v1220 = vadd.f32 %v1135, %v1219
    %v1221 = vpop.f32.mrf.mxu0
    %1222 = vmatprep.mubr.f32.mxu0 %v883
    %1223 = vmatmul.mubr.f32.gmra.mxu0 %v851
    %v1224 = vpop.f32.mrf.mxu0
    %v1225 = vadd.f32 %v1140, %v1224
    %v1226 = vpop.f32.mrf.mxu0
    %1227 = vmatprep.mubr.f32.mxu0 %v884
    %1228 = vmatmul.mubr.f32.gmra.mxu0 %v852
    %v1229 = vpop.f32.mrf.mxu0
    %v1230 = vadd.f32 %v1145, %v1229
    %v1231 = vpop.f32.mrf.mxu0
    %1232 = vmatprep.mubr.f32.mxu0 %v885
    %1233 = vmatmul.mubr.f32.gmra.mxu0 %v853
    %v1234 = vpop.f32.mrf.mxu0
    %v1235 = vadd.f32 %v1150, %v1234
    %v1236 = vpop.f32.mrf.mxu0
    %1237 = vdwg.mxu0
    %v1238 = vadd.f32 %v638, %v1220
    %v1239 = vadd.f32 %v639, %v1225
    %v1240 = vadd.f32 %v640, %v1230
    %v1241 = vadd.f32 %v641, %v1235
    %vm1242 = vcmask 261120
    %1243 = vst.msk [vmem:[#allocation4] sm:$0xff] %vm1242, %v1238
    %1244 = vst.msk [vmem:[#allocation4 + $0x8] sm:$0xff] %vm1242, %v1239
    %1245 = vst.msk [vmem:[#allocation4 + $0x10] sm:$0xff] %vm1242, %v1240
    %1246 = vst.msk [vmem:[#allocation4 + $0x18] sm:$0xff] %vm1242, %v1241
    // Predicated region
    $region22: #{tpu_custom_call.1} parent=1 // pred_check
      _
    $region23: #{tpu_custom_call.1} parent=1 // pred_check_branch
      %1248 = sbr.rel (0) target = $region25
    $region24: #{tpu_custom_call.1} parent=1 // pred_region
      %s1250 = ssub.s32 32, 32
      %1251 = vsyncadd [#allocation3], %s1250
      %s1253 = sshll.u32 [#allocation2], 4
      %s1254 = int_to_ptr.vmem [resolvable:$true] %s1253
      %1256 = dma.vmem_to_hbm [thread:$0]  %s1254, 32, %s4, [#allocation3]
    $region25: #{tpu_custom_call.1} parent=1 // pred_fallthru
      _
    // Predicated region
    $region26: #{tpu_custom_call.1} parent=1 // pred_check
      _
    $region27: #{tpu_custom_call.1} parent=1 // pred_check_branch
      %1258 = sbr.rel (0) target = $region29
    $region28: #{tpu_custom_call.1} parent=1 // pred_region
      %s1260 = ssub.s32 512, 512
      %1261 = vsyncadd [#allocation5], %s1260
      %s1262 = sshll.u32 [#allocation4], 4
      %s1263 = int_to_ptr.vmem [resolvable:$true] %s1262
      %1268 = dma.vmem_to_hbm [thread:$0]  %s1263, 512, %s5, [#allocation5], 128, 128, 8
    $region29: #{tpu_custom_call.1} parent=1 // pred_fallthru
      _
    // Predicated region
    $region30: #{tpu_custom_call.1} parent=1 // pred_check
      _
    $region31: #{tpu_custom_call.1} parent=1 // pred_check_branch
      %1270 = sbr.rel (0) target = $region33
    $region32: #{tpu_custom_call.1} parent=1 // pred_region
      %1271 = dma.done [#allocation3], 32
    $region33: #{tpu_custom_call.1} parent=1 // pred_fallthru
      _
    // Predicated region
    $region34: #{tpu_custom_call.1} parent=1 // pred_check
      _
    $region35: #{tpu_custom_call.1} parent=1 // pred_check_branch
      %1273 = sbr.rel (0) target = $region37
    $region36: #{tpu_custom_call.1} parent=1 // pred_region
      %1274 = dma.done [#allocation5], 512
    $region37: #{tpu_custom_call.1} parent=1 // pred_fallthru
      _
    %1275 = vsyncpa [#allocation3], 1
    %1276 = vsyncpa [#allocation5], 1

</llo_original>
